<compile_context>
chip_gen: v6e
topology: v6e:2x2x1
jax: 0.10.0
libtpu: 0.0.40
codegen_flags: <defaults>
</compile_context>

<pallas_src>
import math

import jax
import jax.numpy as jnp
from jax import lax
from jax.experimental import pallas as pl
from jax.experimental.pallas import tpu as pltpu


def _divisors_desc(n):
    return [d for d in range(n, 0, -1) if n % d == 0]


def _vmem_limit_and_budget():
    """Per-generation vmem_limit_bytes for the kernel and a block/value budget."""
    phys = None
    try:
        info = pltpu.get_tpu_info()
        phys = getattr(info, "vmem_capacity_bytes", None)
    except Exception:
        phys = None
    if not phys:
        phys = 128 * 1024 * 1024
    # 64 MiB on v5e/v6e (128 MiB physical), 32 MiB on v7x (64 MiB physical).
    limit = int(min(phys // 2, 64 * 1024 * 1024))
    budget = int(limit * 0.6)   # blocks (double-buffered) + live traced values
    return limit, budget


# ----------------------------------------------------------------------------
# 3x3 conv, stride 2, zero padding p  (Downsample use_conv=True, dims=2)
# ----------------------------------------------------------------------------
def conv3x3_stride2_pallas(x_nchw, weight_oihw, bias, padding=1,
                           compute_dtype=None, row_tile=None):
    N, C, H, W = x_nchw.shape
    Cout = weight_oihw.shape[0]
    Ho = (H + 2 * padding - 3) // 2 + 1
    Wo = (W + 2 * padding - 3) // 2 + 1

    cdt = jnp.dtype(compute_dtype) if compute_dtype is not None else jnp.dtype(x_nchw.dtype)
    itemsize = cdt.itemsize
    out_itemsize = jnp.dtype(x_nchw.dtype).itemsize
    vmem_limit, budget = _vmem_limit_and_budget()

    # ---- single-pass layout glue (pad fuses into the space-to-depth transpose).
    # The first `padding` rows/cols match PyTorch zero padding; the extra zero
    # rows/cols at the bottom/right are never read by a valid tap.
    Hp, Wp = 2 * (Ho + 1), 2 * (Wo + 1)
    xp = jnp.pad(
        x_nchw,
        ((0, 0), (0, 0),
         (padding, Hp - H - padding),
         (padding, Wp - W - padding)))
    # parity planes: x_s2d[n, ph, pw, a, b, c] == xp[n, c, 2a+ph, 2b+pw]
    x_s2d = jnp.transpose(
        xp.reshape(N, C, Ho + 1, 2, Wo + 1, 2), (0, 3, 5, 2, 4, 1)).astype(cdt)

    w_t = jnp.transpose(weight_oihw, (2, 3, 1, 0)).astype(cdt)    # (3, 3, C, Cout)
    b_t = bias.astype(jnp.float32).reshape(1, Cout)

    # ---- tile selection -------------------------------------------------------
    def fits(th, tn):
        x_blk = 4 * th * (Wo + 1) * C * itemsize         # 4 parity planes
        halo_blk = 4 * (Wo + 1) * C * itemsize
        w_blk = 9 * C * tn * itemsize + tn * 4
        o_blk = th * Wo * tn * out_itemsize
        blocks = 2 * (x_blk + halo_blk + w_blk + o_blk)  # double-buffered
        live = 3 * th * Wo * tn * 4 + 2 * th * Wo * C * itemsize
        return blocks + live <= budget

    # Cout tile: full Cout, or a 128-multiple divisor (keeps the (Wo, TN) store
    # layout legal and bounds the resident weight block for large channel counts).
    tn_opts = [d for d in _divisors_desc(Cout) if d == Cout or d % 128 == 0]
    TN = tn_opts[-1]
    for cand in tn_opts:
        if 2 * 9 * C * cand * itemsize <= 0.4 * budget:
            TN = cand
            break

    if row_tile is not None:
        assert Ho % row_tile == 0, "row_tile must divide Ho"
        TH = int(row_tile)
    else:
        TH = next((d for d in _divisors_desc(Ho) if fits(d, TN)), 1)
        # v7x has 2 TensorCores per chip: avoid a single-step grid when possible.
        if N == 1 and TH == Ho and TN == Cout and Ho > 1:
            proper = [d for d in _divisors_desc(Ho)[1:] if fits(d, TN)]
            if proper:
                TH = proper[0]
    R = Ho // TH
    J = Cout // TN

    def conv_kernel(x_ref, halo_ref, w_ref, b_ref, o_ref):
        # x_ref:    (1, 2, 2, TH, Wo+1, C)   parity rows [r*TH, r*TH+TH)
        # halo_ref: (1, 2, 2, 1,  Wo+1, C)   parity row  r*TH+TH (halo for kh==2)
        # w_ref: (3, 3, C, TN)    b_ref: (1, TN) f32    o_ref: (1, TH, Wo, TN)
        acc = None      # (TH*Wo, TN) f32      dh==0 taps, all output rows
        acc_top = None  # ((TH-1)*Wo, TN) f32  dh==1 taps, rows 0..TH-2 (from x_ref)
        acc_bot = None  # (Wo, TN) f32         dh==1 taps, row TH-1     (from halo)
        for kh in range(3):
            ph, dh = kh % 2, kh // 2
            for kw in range(3):
                pw, dw = kw % 2, kw // 2
                w_tap = w_ref[kh, kw]                                  # (C, TN)
                if dh == 0:
                    slab = x_ref[0, ph, pw, :, dw:dw + Wo, :].reshape(TH * Wo, C)
                    c = jnp.dot(slab, w_tap, preferred_element_type=jnp.float32)
                    acc = c if acc is None else acc + c
                else:
                    if TH > 1:
                        slab_t = x_ref[0, ph, pw, 1:, dw:dw + Wo, :].reshape(
                            (TH - 1) * Wo, C)
                        ct = jnp.dot(slab_t, w_tap, preferred_element_type=jnp.float32)
                        acc_top = ct if acc_top is None else acc_top + ct
                    slab_b = halo_ref[0, ph, pw, 0, dw:dw + Wo, :]     # (Wo, C)
                    cb = jnp.dot(slab_b, w_tap, preferred_element_type=jnp.float32)
                    acc_bot = cb if acc_bot is None else acc_bot + cb
        b_row = b_ref[...]                                   # (1, TN) broadcast
        if TH > 1:
            top = acc[: (TH - 1) * Wo] + acc_top + b_row
            bot = acc[(TH - 1) * Wo:] + acc_bot + b_row
            o_ref[0, : TH - 1] = top.reshape(TH - 1, Wo, TN).astype(o_ref.dtype)
            o_ref[0, TH - 1:] = bot.reshape(1, Wo, TN).astype(o_ref.dtype)
        else:
            out = acc + acc_bot + b_row
            o_ref[0] = out.reshape(1, Wo, TN).astype(o_ref.dtype)

    flops = 2 * N * Ho * Wo * C * Cout * 9
    bytes_accessed = int(x_s2d.size * itemsize + 9 * C * Cout * itemsize
                         + N * Ho * Wo * Cout * out_itemsize)

    out_nhwc = pl.pallas_call(
        conv_kernel,
        out_shape=jax.ShapeDtypeStruct((N, Ho, Wo, Cout), x_nchw.dtype),
        grid_spec=pltpu.PrefetchScalarGridSpec(
            num_scalar_prefetch=0,
            grid=(N, R, J),
            in_specs=[
                pl.BlockSpec((1, 2, 2, TH, Wo + 1, C),
                             lambda n, r, j: (n, 0, 0, r, 0, 0)),
                # halo: single parity row at r*TH + TH (block size 1 -> row index)
                pl.BlockSpec((1, 2, 2, 1, Wo + 1, C),
                             lambda n, r, j: (n, 0, 0, (r + 1) * TH, 0, 0)),
                pl.BlockSpec((3, 3, C, TN), lambda n, r, j: (0, 0, 0, j)),
                pl.BlockSpec((1, TN), lambda n, r, j: (0, j)),
            ],
            out_specs=pl.BlockSpec((1, TH, Wo, TN), lambda n, r, j: (n, r, 0, j)),
        ),
        compiler_params=pltpu.CompilerParams(
            dimension_semantics=("parallel", "parallel", "parallel"),
            vmem_limit_bytes=vmem_limit),
        cost_estimate=pl.CostEstimate(flops=flops, transcendentals=0,
                                      bytes_accessed=bytes_accessed),
    )(x_s2d, x_s2d, w_t, b_t)

    # TODO(synk): drop this NHWC->NCHW HBM pass when downstream consumers accept NHWC.
    return jnp.transpose(out_nhwc, (0, 3, 1, 2))


# ----------------------------------------------------------------------------
# 2x2 average pool, stride 2 (Downsample use_conv=False, dims=2)
# Odd H/W are truncated (floor), matching nn.AvgPool2d(kernel=2, stride=2).
# ----------------------------------------------------------------------------
def avgpool2x2_pallas(x_nchw):
    N, C, H, W = x_nchw.shape
    Ho, Wo = H // 2, W // 2
    itemsize = jnp.dtype(x_nchw.dtype).itemsize
    vmem_limit, budget = _vmem_limit_and_budget()

    # single fused slice + reshape + transpose pass to channels-FIRST parity
    # planes; the kernel then writes NCHW directly (no wrapper pass on the way out).
    x_s2d = jnp.transpose(
        x_nchw[:, :, :2 * Ho, :2 * Wo].reshape(N, C, Ho, 2, Wo, 2),
        (0, 3, 5, 1, 2, 4))                                # (N, 2, 2, C, Ho, Wo)

    def fits(tc, th):
        in_b = 4 * tc * th * Wo * itemsize
        out_b = tc * th * Wo * itemsize
        live = 2 * tc * th * Wo * 4
        return 2 * (in_b + out_b) + live <= budget

    # row tile must keep the trailing (TH, Wo) block dims sublane-legal
    row_opts = [d for d in _divisors_desc(Ho) if d == Ho or d % 8 == 0] or [Ho]
    TC, TH = 1, row_opts[-1]
    found = False
    for tc in _divisors_desc(C):
        for th in row_opts:
            if fits(tc, th):
                TC, TH = tc, th
                found = True
                break
        if found:
            break

    def pool_kernel(x_ref, o_ref):
        s = (x_ref[0, 0, 0].astype(jnp.float32) + x_ref[0, 0, 1].astype(jnp.float32)
             + x_ref[0, 1, 0].astype(jnp.float32) + x_ref[0, 1, 1].astype(jnp.float32))
        o_ref[0] = (s * 0.25).astype(o_ref.dtype)

    bytes_accessed = int(5 * N * Ho * Wo * C * itemsize)

    return pl.pallas_call(
        pool_kernel,
        out_shape=jax.ShapeDtypeStruct((N, C, Ho, Wo), x_nchw.dtype),
        grid=(N, C // TC, Ho // TH),
        in_specs=[pl.BlockSpec((1, 2, 2, TC, TH, Wo),
                               lambda n, c, r: (n, 0, 0, c, r, 0))],
        out_specs=pl.BlockSpec((1, TC, TH, Wo), lambda n, c, r: (n, c, r, 0)),
        compiler_params=pltpu.CompilerParams(
            dimension_semantics=("parallel", "parallel", "parallel"),
            vmem_limit_bytes=vmem_limit),
        cost_estimate=pl.CostEstimate(flops=4 * N * Ho * Wo * C, transcendentals=0,
                                      bytes_accessed=bytes_accessed),
    )(x_s2d)


# ----------------------------------------------------------------------------
# Downsample module (JAX/Pallas port of the PyTorch nn.Module)
# ----------------------------------------------------------------------------
class Downsample:
    def __init__(self, channels, use_conv, dims=2, out_channels=None,
                 padding=1, *, key=None, compute_dtype=None):
        self.channels = channels
        self.out_channels = out_channels or channels
        self.use_conv = use_conv
        self.dims = dims
        self.padding = padding
        self.compute_dtype = compute_dtype
        if dims != 2:
            # TODO(synk): dims=1 (Conv1d/AvgPool1d) and dims=3 (Conv3d/AvgPool3d) not implemented.
            raise NotImplementedError("only dims=2 is implemented")
        if use_conv:
            if key is None:
                key = jax.random.PRNGKey(42)
            kw_, kb_ = jax.random.split(key)
            fan_in = channels * 3 * 3
            bound = 1.0 / math.sqrt(fan_in)   # PyTorch Conv2d default init range
            self.weight = jax.random.uniform(
                kw_, (self.out_channels, channels, 3, 3), jnp.float32, -bound, bound)
            self.bias = jax.random.uniform(
                kb_, (self.out_channels,), jnp.float32, -bound, bound)
        else:
            assert self.channels == self.out_channels

    def __call__(self, x):
        assert x.shape[1] == self.channels
        if self.use_conv:
            return conv3x3_stride2_pallas(x, self.weight, self.bias, self.padding,
                                          compute_dtype=self.compute_dtype)
        return avgpool2x2_pallas(x)


# ----------------------------------------------------------------------------
if __name__ == "__main__":
    key = jax.random.PRNGKey(0)
    kx, kp = jax.random.split(key)

    # NCHW input, like the PyTorch module
    x = jax.random.normal(kx, (2, 4, 16, 16), jnp.float32)

    # --- use_conv=True path --------------------------------------------------
    ds_conv = Downsample(channels=4, use_conv=True, dims=2, out_channels=8,
                         padding=1, key=kp)
    y = ds_conv(x)
    jax.block_until_ready(y)
    assert y.shape == (2, 8, 8, 8), y.shape

    y_ref = lax.conv_general_dilated(
        x, ds_conv.weight, window_strides=(2, 2),
        padding=[(1, 1), (1, 1)],
        dimension_numbers=("NCHW", "OIHW", "NCHW"),
    ) + ds_conv.bias[None, :, None, None]
    assert jnp.allclose(y, y_ref, atol=1e-4, rtol=1e-4), "conv path mismatch"

    # same conv with a forced small row tile -> exercises multi-tile + halo path
    y_tiled = conv3x3_stride2_pallas(x, ds_conv.weight, ds_conv.bias,
                                     padding=1, row_tile=2)
    jax.block_until_ready(y_tiled)
    assert jnp.allclose(y_tiled, y_ref, atol=1e-4, rtol=1e-4), "tiled conv mismatch"

    # bf16 compute path (f32 accumulation) -> looser tolerance
    y_bf16 = conv3x3_stride2_pallas(x, ds_conv.weight, ds_conv.bias, padding=1,
                                    compute_dtype=jnp.bfloat16)
    jax.block_until_ready(y_bf16)
    assert jnp.allclose(y_bf16, y_ref, atol=5e-2, rtol=5e-2), "bf16 conv mismatch"

    # --- use_conv=False path (avg pool) ---------------------------------------
    ds_pool = Downsample(channels=4, use_conv=False, dims=2)
    y2 = ds_pool(x)
    jax.block_until_ready(y2)
    assert y2.shape == (2, 4, 8, 8), y2.shape

    y2_ref = x.reshape(2, 4, 8, 2, 8, 2).mean(axis=(3, 5))
    assert jnp.allclose(y2, y2_ref, atol=1e-5, rtol=1e-5), "pool path mismatch"

    print("KERNEL_OK")
</pallas_src>

<mosaic_0001>
module attributes {stable_mosaic.version = 11 : i64} {
  func.func @conv_kernel(%arg0: i32, %arg1: i32, %arg2: i32, %arg3: memref<1x2x2x8x9x4xf32, #tpu.memory_space<vmem>>, %arg4: memref<1x2x2x1x9x4xf32, #tpu.memory_space<vmem>>, %arg5: memref<3x3x4x8xf32, #tpu.memory_space<vmem>>, %arg6: memref<1x8xf32, #tpu.memory_space<vmem>>, %arg7: memref<1x8x8x8xf32, #tpu.memory_space<vmem>>) attributes {dimension_semantics = [#tpu.dimension_semantics<parallel>, #tpu.dimension_semantics<parallel>, #tpu.dimension_semantics<parallel>], iteration_bounds = array<i64: 2, 1, 1>, scalar_prefetch = 0 : i64, scratch_operands = 0 : i64, tpu.core_type = #tpu.core_type<tc>, window_params = [{transform_indices = @transform_0, window_bounds = array<i64: 1, 2, 2, 8, 9, 4>}, {transform_indices = @transform_1, window_bounds = array<i64: 1, 2, 2, 1, 9, 4>}, {transform_indices = @transform_2, window_bounds = array<i64: 3, 3, 4, 8>}, {transform_indices = @transform_3, window_bounds = array<i64: 1, 8>}, {transform_indices = @transform_4, window_bounds = array<i64: 1, 8, 8, 8>}]} {
    %c0 = arith.constant 0 : index
    %c0_0 = arith.constant 0 : index
    %c0_1 = arith.constant 0 : index
    %c0_2 = arith.constant 0 : index
    %0 = vector.load %arg5[%c0, %c0_0, %c0_1, %c0_2] : memref<3x3x4x8xf32, #tpu.memory_space<vmem>>, vector<1x1x4x8xf32>
    %1 = vector.shape_cast %0 : vector<1x1x4x8xf32> to vector<4x8xf32>
    %c0_3 = arith.constant 0 : index
    %c0_4 = arith.constant 0 : index
    %c0_5 = arith.constant 0 : index
    %c0_6 = arith.constant 0 : index
    %c0_7 = arith.constant 0 : index
    %c0_8 = arith.constant 0 : index
    %2 = vector.load %arg3[%c0_3, %c0_4, %c0_5, %c0_6, %c0_7, %c0_8] : memref<1x2x2x8x9x4xf32, #tpu.memory_space<vmem>>, vector<1x1x1x8x8x4xf32>
    %3 = vector.shape_cast %2 : vector<1x1x1x8x8x4xf32> to vector<8x8x4xf32>
    %4 = vector.shape_cast %3 : vector<8x8x4xf32> to vector<64x4xf32>
    %cst = arith.constant dense<0.000000e+00> : vector<64x8xf32>
    %5 = tpu.matmul %4, %1, %cst {dimension_numbers = #tpu.dot_dimension_numbers<[1], [0], [0], [1], [0, 0, 1, 1], [], []>} : vector<64x4xf32>, vector<4x8xf32>, vector<64x8xf32> -> vector<64x8xf32>
    %c0_9 = arith.constant 0 : index
    %c1 = arith.constant 1 : index
    %c0_10 = arith.constant 0 : index
    %c0_11 = arith.constant 0 : index
    %6 = vector.load %arg5[%c0_9, %c1, %c0_10, %c0_11] : memref<3x3x4x8xf32, #tpu.memory_space<vmem>>, vector<1x1x4x8xf32>
    %7 = vector.shape_cast %6 : vector<1x1x4x8xf32> to vector<4x8xf32>
    %c0_12 = arith.constant 0 : index
    %c0_13 = arith.constant 0 : index
    %c1_14 = arith.constant 1 : index
    %c0_15 = arith.constant 0 : index
    %c0_16 = arith.constant 0 : index
    %c0_17 = arith.constant 0 : index
    %8 = vector.load %arg3[%c0_12, %c0_13, %c1_14, %c0_15, %c0_16, %c0_17] : memref<1x2x2x8x9x4xf32, #tpu.memory_space<vmem>>, vector<1x1x1x8x8x4xf32>
    %9 = vector.shape_cast %8 : vector<1x1x1x8x8x4xf32> to vector<8x8x4xf32>
    %10 = vector.shape_cast %9 : vector<8x8x4xf32> to vector<64x4xf32>
    %cst_18 = arith.constant dense<0.000000e+00> : vector<64x8xf32>
    %11 = tpu.matmul %10, %7, %cst_18 {dimension_numbers = #tpu.dot_dimension_numbers<[1], [0], [0], [1], [0, 0, 1, 1], [], []>} : vector<64x4xf32>, vector<4x8xf32>, vector<64x8xf32> -> vector<64x8xf32>
    %12 = arith.addf %5, %11 : vector<64x8xf32>
    %c0_19 = arith.constant 0 : index
    %c2 = arith.constant 2 : index
    %c0_20 = arith.constant 0 : index
    %c0_21 = arith.constant 0 : index
    %13 = vector.load %arg5[%c0_19, %c2, %c0_20, %c0_21] : memref<3x3x4x8xf32, #tpu.memory_space<vmem>>, vector<1x1x4x8xf32>
    %14 = vector.shape_cast %13 : vector<1x1x4x8xf32> to vector<4x8xf32>
    %c0_22 = arith.constant 0 : index
    %c0_23 = arith.constant 0 : index
    %c0_24 = arith.constant 0 : index
    %c0_25 = arith.constant 0 : index
    %c1_26 = arith.constant 1 : index
    %c0_27 = arith.constant 0 : index
    %15 = vector.load %arg3[%c0_22, %c0_23, %c0_24, %c0_25, %c1_26, %c0_27] : memref<1x2x2x8x9x4xf32, #tpu.memory_space<vmem>>, vector<1x1x1x8x8x4xf32>
    %16 = vector.shape_cast %15 : vector<1x1x1x8x8x4xf32> to vector<8x8x4xf32>
    %17 = vector.shape_cast %16 : vector<8x8x4xf32> to vector<64x4xf32>
    %cst_28 = arith.constant dense<0.000000e+00> : vector<64x8xf32>
    %18 = tpu.matmul %17, %14, %cst_28 {dimension_numbers = #tpu.dot_dimension_numbers<[1], [0], [0], [1], [0, 0, 1, 1], [], []>} : vector<64x4xf32>, vector<4x8xf32>, vector<64x8xf32> -> vector<64x8xf32>
    %19 = arith.addf %12, %18 : vector<64x8xf32>
    %c1_29 = arith.constant 1 : index
    %c0_30 = arith.constant 0 : index
    %c0_31 = arith.constant 0 : index
    %c0_32 = arith.constant 0 : index
    %20 = vector.load %arg5[%c1_29, %c0_30, %c0_31, %c0_32] : memref<3x3x4x8xf32, #tpu.memory_space<vmem>>, vector<1x1x4x8xf32>
    %21 = vector.shape_cast %20 : vector<1x1x4x8xf32> to vector<4x8xf32>
    %c0_33 = arith.constant 0 : index
    %c1_34 = arith.constant 1 : index
    %c0_35 = arith.constant 0 : index
    %c0_36 = arith.constant 0 : index
    %c0_37 = arith.constant 0 : index
    %c0_38 = arith.constant 0 : index
    %22 = vector.load %arg3[%c0_33, %c1_34, %c0_35, %c0_36, %c0_37, %c0_38] : memref<1x2x2x8x9x4xf32, #tpu.memory_space<vmem>>, vector<1x1x1x8x8x4xf32>
    %23 = vector.shape_cast %22 : vector<1x1x1x8x8x4xf32> to vector<8x8x4xf32>
    %24 = vector.shape_cast %23 : vector<8x8x4xf32> to vector<64x4xf32>
    %cst_39 = arith.constant dense<0.000000e+00> : vector<64x8xf32>
    %25 = tpu.matmul %24, %21, %cst_39 {dimension_numbers = #tpu.dot_dimension_numbers<[1], [0], [0], [1], [0, 0, 1, 1], [], []>} : vector<64x4xf32>, vector<4x8xf32>, vector<64x8xf32> -> vector<64x8xf32>
    %26 = arith.addf %19, %25 : vector<64x8xf32>
    %c1_40 = arith.constant 1 : index
    %c1_41 = arith.constant 1 : index
    %c0_42 = arith.constant 0 : index
    %c0_43 = arith.constant 0 : index
    %27 = vector.load %arg5[%c1_40, %c1_41, %c0_42, %c0_43] : memref<3x3x4x8xf32, #tpu.memory_space<vmem>>, vector<1x1x4x8xf32>
    %28 = vector.shape_cast %27 : vector<1x1x4x8xf32> to vector<4x8xf32>
    %c0_44 = arith.constant 0 : index
    %c1_45 = arith.constant 1 : index
    %c1_46 = arith.constant 1 : index
    %c0_47 = arith.constant 0 : index
    %c0_48 = arith.constant 0 : index
    %c0_49 = arith.constant 0 : index
    %29 = vector.load %arg3[%c0_44, %c1_45, %c1_46, %c0_47, %c0_48, %c0_49] : memref<1x2x2x8x9x4xf32, #tpu.memory_space<vmem>>, vector<1x1x1x8x8x4xf32>
    %30 = vector.shape_cast %29 : vector<1x1x1x8x8x4xf32> to vector<8x8x4xf32>
    %31 = vector.shape_cast %30 : vector<8x8x4xf32> to vector<64x4xf32>
    %cst_50 = arith.constant dense<0.000000e+00> : vector<64x8xf32>
    %32 = tpu.matmul %31, %28, %cst_50 {dimension_numbers = #tpu.dot_dimension_numbers<[1], [0], [0], [1], [0, 0, 1, 1], [], []>} : vector<64x4xf32>, vector<4x8xf32>, vector<64x8xf32> -> vector<64x8xf32>
    %33 = arith.addf %26, %32 : vector<64x8xf32>
    %c1_51 = arith.constant 1 : index
    %c2_52 = arith.constant 2 : index
    %c0_53 = arith.constant 0 : index
    %c0_54 = arith.constant 0 : index
    %34 = vector.load %arg5[%c1_51, %c2_52, %c0_53, %c0_54] : memref<3x3x4x8xf32, #tpu.memory_space<vmem>>, vector<1x1x4x8xf32>
    %35 = vector.shape_cast %34 : vector<1x1x4x8xf32> to vector<4x8xf32>
    %c0_55 = arith.constant 0 : index
    %c1_56 = arith.constant 1 : index
    %c0_57 = arith.constant 0 : index
    %c0_58 = arith.constant 0 : index
    %c1_59 = arith.constant 1 : index
    %c0_60 = arith.constant 0 : index
    %36 = vector.load %arg3[%c0_55, %c1_56, %c0_57, %c0_58, %c1_59, %c0_60] : memref<1x2x2x8x9x4xf32, #tpu.memory_space<vmem>>, vector<1x1x1x8x8x4xf32>
    %37 = vector.shape_cast %36 : vector<1x1x1x8x8x4xf32> to vector<8x8x4xf32>
    %38 = vector.shape_cast %37 : vector<8x8x4xf32> to vector<64x4xf32>
    %cst_61 = arith.constant dense<0.000000e+00> : vector<64x8xf32>
    %39 = tpu.matmul %38, %35, %cst_61 {dimension_numbers = #tpu.dot_dimension_numbers<[1], [0], [0], [1], [0, 0, 1, 1], [], []>} : vector<64x4xf32>, vector<4x8xf32>, vector<64x8xf32> -> vector<64x8xf32>
    %40 = arith.addf %33, %39 : vector<64x8xf32>
    %c2_62 = arith.constant 2 : index
    %c0_63 = arith.constant 0 : index
    %c0_64 = arith.constant 0 : index
    %c0_65 = arith.constant 0 : index
    %41 = vector.load %arg5[%c2_62, %c0_63, %c0_64, %c0_65] : memref<3x3x4x8xf32, #tpu.memory_space<vmem>>, vector<1x1x4x8xf32>
    %42 = vector.shape_cast %41 : vector<1x1x4x8xf32> to vector<4x8xf32>
    %c0_66 = arith.constant 0 : index
    %c0_67 = arith.constant 0 : index
    %c0_68 = arith.constant 0 : index
    %c1_69 = arith.constant 1 : index
    %c0_70 = arith.constant 0 : index
    %c0_71 = arith.constant 0 : index
    %43 = vector.load %arg3[%c0_66, %c0_67, %c0_68, %c1_69, %c0_70, %c0_71] : memref<1x2x2x8x9x4xf32, #tpu.memory_space<vmem>>, vector<1x1x1x7x8x4xf32>
    %44 = vector.shape_cast %43 : vector<1x1x1x7x8x4xf32> to vector<7x8x4xf32>
    %45 = vector.shape_cast %44 : vector<7x8x4xf32> to vector<56x4xf32>
    %cst_72 = arith.constant dense<0.000000e+00> : vector<56x8xf32>
    %46 = tpu.matmul %45, %42, %cst_72 {dimension_numbers = #tpu.dot_dimension_numbers<[1], [0], [0], [1], [0, 0, 1, 1], [], []>} : vector<56x4xf32>, vector<4x8xf32>, vector<56x8xf32> -> vector<56x8xf32>
    %c0_73 = arith.constant 0 : index
    %c0_74 = arith.constant 0 : index
    %c0_75 = arith.constant 0 : index
    %c0_76 = arith.constant 0 : index
    %c0_77 = arith.constant 0 : index
    %c0_78 = arith.constant 0 : index
    %47 = vector.load %arg4[%c0_73, %c0_74, %c0_75, %c0_76, %c0_77, %c0_78] : memref<1x2x2x1x9x4xf32, #tpu.memory_space<vmem>>, vector<1x1x1x1x8x4xf32>
    %48 = vector.shape_cast %47 : vector<1x1x1x1x8x4xf32> to vector<8x4xf32>
    %cst_79 = arith.constant dense<0.000000e+00> : vector<8x8xf32>
    %49 = tpu.matmul %48, %42, %cst_79 {dimension_numbers = #tpu.dot_dimension_numbers<[1], [0], [0], [1], [0, 0, 1, 1], [], []>} : vector<8x4xf32>, vector<4x8xf32>, vector<8x8xf32> -> vector<8x8xf32>
    %c2_80 = arith.constant 2 : index
    %c1_81 = arith.constant 1 : index
    %c0_82 = arith.constant 0 : index
    %c0_83 = arith.constant 0 : index
    %50 = vector.load %arg5[%c2_80, %c1_81, %c0_82, %c0_83] : memref<3x3x4x8xf32, #tpu.memory_space<vmem>>, vector<1x1x4x8xf32>
    %51 = vector.shape_cast %50 : vector<1x1x4x8xf32> to vector<4x8xf32>
    %c0_84 = arith.constant 0 : index
    %c0_85 = arith.constant 0 : index
    %c1_86 = arith.constant 1 : index
    %c1_87 = arith.constant 1 : index
    %c0_88 = arith.constant 0 : index
    %c0_89 = arith.constant 0 : index
    %52 = vector.load %arg3[%c0_84, %c0_85, %c1_86, %c1_87, %c0_88, %c0_89] : memref<1x2x2x8x9x4xf32, #tpu.memory_space<vmem>>, vector<1x1x1x7x8x4xf32>
    %53 = vector.shape_cast %52 : vector<1x1x1x7x8x4xf32> to vector<7x8x4xf32>
    %54 = vector.shape_cast %53 : vector<7x8x4xf32> to vector<56x4xf32>
    %cst_90 = arith.constant dense<0.000000e+00> : vector<56x8xf32>
    %55 = tpu.matmul %54, %51, %cst_90 {dimension_numbers = #tpu.dot_dimension_numbers<[1], [0], [0], [1], [0, 0, 1, 1], [], []>} : vector<56x4xf32>, vector<4x8xf32>, vector<56x8xf32> -> vector<56x8xf32>
    %56 = arith.addf %46, %55 : vector<56x8xf32>
    %c0_91 = arith.constant 0 : index
    %c0_92 = arith.constant 0 : index
    %c1_93 = arith.constant 1 : index
    %c0_94 = arith.constant 0 : index
    %c0_95 = arith.constant 0 : index
    %c0_96 = arith.constant 0 : index
    %57 = vector.load %arg4[%c0_91, %c0_92, %c1_93, %c0_94, %c0_95, %c0_96] : memref<1x2x2x1x9x4xf32, #tpu.memory_space<vmem>>, vector<1x1x1x1x8x4xf32>
    %58 = vector.shape_cast %57 : vector<1x1x1x1x8x4xf32> to vector<8x4xf32>
    %cst_97 = arith.constant dense<0.000000e+00> : vector<8x8xf32>
    %59 = tpu.matmul %58, %51, %cst_97 {dimension_numbers = #tpu.dot_dimension_numbers<[1], [0], [0], [1], [0, 0, 1, 1], [], []>} : vector<8x4xf32>, vector<4x8xf32>, vector<8x8xf32> -> vector<8x8xf32>
    %60 = arith.addf %49, %59 : vector<8x8xf32>
    %c2_98 = arith.constant 2 : index
    %c2_99 = arith.constant 2 : index
    %c0_100 = arith.constant 0 : index
    %c0_101 = arith.constant 0 : index
    %61 = vector.load %arg5[%c2_98, %c2_99, %c0_100, %c0_101] : memref<3x3x4x8xf32, #tpu.memory_space<vmem>>, vector<1x1x4x8xf32>
    %62 = vector.shape_cast %61 : vector<1x1x4x8xf32> to vector<4x8xf32>
    %c0_102 = arith.constant 0 : index
    %c0_103 = arith.constant 0 : index
    %c0_104 = arith.constant 0 : index
    %c1_105 = arith.constant 1 : index
    %c1_106 = arith.constant 1 : index
    %c0_107 = arith.constant 0 : index
    %63 = vector.load %arg3[%c0_102, %c0_103, %c0_104, %c1_105, %c1_106, %c0_107] : memref<1x2x2x8x9x4xf32, #tpu.memory_space<vmem>>, vector<1x1x1x7x8x4xf32>
    %64 = vector.shape_cast %63 : vector<1x1x1x7x8x4xf32> to vector<7x8x4xf32>
    %65 = vector.shape_cast %64 : vector<7x8x4xf32> to vector<56x4xf32>
    %cst_108 = arith.constant dense<0.000000e+00> : vector<56x8xf32>
    %66 = tpu.matmul %65, %62, %cst_108 {dimension_numbers = #tpu.dot_dimension_numbers<[1], [0], [0], [1], [0, 0, 1, 1], [], []>} : vector<56x4xf32>, vector<4x8xf32>, vector<56x8xf32> -> vector<56x8xf32>
    %67 = arith.addf %56, %66 : vector<56x8xf32>
    %c0_109 = arith.constant 0 : index
    %c0_110 = arith.constant 0 : index
    %c0_111 = arith.constant 0 : index
    %c0_112 = arith.constant 0 : index
    %c1_113 = arith.constant 1 : index
    %c0_114 = arith.constant 0 : index
    %68 = vector.load %arg4[%c0_109, %c0_110, %c0_111, %c0_112, %c1_113, %c0_114] : memref<1x2x2x1x9x4xf32, #tpu.memory_space<vmem>>, vector<1x1x1x1x8x4xf32>
    %69 = vector.shape_cast %68 : vector<1x1x1x1x8x4xf32> to vector<8x4xf32>
    %cst_115 = arith.constant dense<0.000000e+00> : vector<8x8xf32>
    %70 = tpu.matmul %69, %62, %cst_115 {dimension_numbers = #tpu.dot_dimension_numbers<[1], [0], [0], [1], [0, 0, 1, 1], [], []>} : vector<8x4xf32>, vector<4x8xf32>, vector<8x8xf32> -> vector<8x8xf32>
    %71 = arith.addf %60, %70 : vector<8x8xf32>
    %c0_116 = arith.constant 0 : index
    %c0_117 = arith.constant 0 : index
    %72 = vector.load %arg6[%c0_116, %c0_117] : memref<1x8xf32, #tpu.memory_space<vmem>>, vector<1x8xf32>
    %73 = vector.extract_strided_slice %40 {offsets = [0, 0], sizes = [56, 8], strides = [1, 1]} : vector<64x8xf32> to vector<56x8xf32>
    %74 = arith.addf %73, %67 : vector<56x8xf32>
    %75 = vector.broadcast %72 : vector<1x8xf32> to vector<56x8xf32>
    %76 = arith.addf %74, %75 : vector<56x8xf32>
    %77 = vector.extract_strided_slice %40 {offsets = [56, 0], sizes = [8, 8], strides = [1, 1]} : vector<64x8xf32> to vector<8x8xf32>
    %78 = arith.addf %77, %71 : vector<8x8xf32>
    %79 = vector.broadcast %72 : vector<1x8xf32> to vector<8x8xf32>
    %80 = arith.addf %78, %79 : vector<8x8xf32>
    %81 = vector.shape_cast %76 : vector<56x8xf32> to vector<7x8x8xf32>
    %c0_118 = arith.constant 0 : index
    %c0_119 = arith.constant 0 : index
    %c0_120 = arith.constant 0 : index
    %c0_121 = arith.constant 0 : index
    %82 = vector.load %arg7[%c0_118, %c0_119, %c0_120, %c0_121] : memref<1x8x8x8xf32, #tpu.memory_space<vmem>>, vector<1x7x8x8xf32>
    %83 = vector.shape_cast %82 : vector<1x7x8x8xf32> to vector<7x8x8xf32>
    %84 = vector.shape_cast %81 : vector<7x8x8xf32> to vector<1x7x8x8xf32>
    tpu.vector_store %arg7[%c0_118, %c0_119, %c0_120, %c0_121], %84 {strides = array<i32>} : memref<1x8x8x8xf32, #tpu.memory_space<vmem>>, vector<1x7x8x8xf32>,
    %85 = vector.shape_cast %80 : vector<8x8xf32> to vector<1x8x8xf32>
    %c0_122 = arith.constant 0 : index
    %c7 = arith.constant 7 : index
    %c0_123 = arith.constant 0 : index
    %c0_124 = arith.constant 0 : index
    %86 = vector.load %arg7[%c0_122, %c7, %c0_123, %c0_124] : memref<1x8x8x8xf32, #tpu.memory_space<vmem>>, vector<1x1x8x8xf32>
    %87 = vector.shape_cast %86 : vector<1x1x8x8xf32> to vector<1x8x8xf32>
    %88 = vector.shape_cast %85 : vector<1x8x8xf32> to vector<1x1x8x8xf32>
    tpu.vector_store %arg7[%c0_122, %c7, %c0_123, %c0_124], %88 {strides = array<i32>} : memref<1x8x8x8xf32, #tpu.memory_space<vmem>>, vector<1x1x8x8xf32>,
    return
  }
  func.func @transform_0(%arg0: i32, %arg1: i32, %arg2: i32) -> (i32, i32, i32, i32, i32, i32) {
    %c0_i32 = arith.constant 0 : i32
    %c0_i32_0 = arith.constant 0 : i32
    %c0_i32_1 = arith.constant 0 : i32
    %c0_i32_2 = arith.constant 0 : i32
    %c0_i32_3 = arith.constant 0 : i32
    return %arg0, %c0_i32, %c0_i32_0, %arg1, %c0_i32_1, %c0_i32_2 : i32, i32, i32, i32, i32, i32
  }
  func.func @transform_1(%arg0: i32, %arg1: i32, %arg2: i32) -> (i32, i32, i32, i32, i32, i32) {
    %c1_i32 = arith.constant 1 : i32
    %0 = arith.addi %arg1, %c1_i32 : i32
    %c8_i32 = arith.constant 8 : i32
    %1 = arith.muli %0, %c8_i32 : i32
    %c0_i32 = arith.constant 0 : i32
    %c0_i32_0 = arith.constant 0 : i32
    %c0_i32_1 = arith.constant 0 : i32
    %c0_i32_2 = arith.constant 0 : i32
    %c0_i32_3 = arith.constant 0 : i32
    return %arg0, %c0_i32, %c0_i32_0, %1, %c0_i32_1, %c0_i32_2 : i32, i32, i32, i32, i32, i32
  }
  func.func @transform_2(%arg0: i32, %arg1: i32, %arg2: i32) -> (i32, i32, i32, i32) {
    %c0_i32 = arith.constant 0 : i32
    %c0_i32_0 = arith.constant 0 : i32
    %c0_i32_1 = arith.constant 0 : i32
    %c0_i32_2 = arith.constant 0 : i32
    return %c0_i32, %c0_i32_0, %c0_i32_1, %arg2 : i32, i32, i32, i32
  }
  func.func @transform_3(%arg0: i32, %arg1: i32, %arg2: i32) -> (i32, i32) {
    %c0_i32 = arith.constant 0 : i32
    %c0_i32_0 = arith.constant 0 : i32
    return %c0_i32, %arg2 : i32, i32
  }
  func.func @transform_4(%arg0: i32, %arg1: i32, %arg2: i32) -> (i32, i32, i32, i32) {
    %c0_i32 = arith.constant 0 : i32
    %c0_i32_0 = arith.constant 0 : i32
    return %arg0, %arg1, %c0_i32, %arg2 : i32, i32, i32, i32
  }
}

</mosaic_0001>

<llo_original>
// kernel: tpu_custom_call.1
$region0: #{tpu_custom_call.1}
  #allocation0 [shape = 'u32[]', space=smem, size = 0x4, offset = 0x4, fixed_abs, tag = 'smem constant byte address 0x4 - core index']
  #allocation1 [shape = 'u32[144,128]{1,0:T(1,128)}', space=vmem, size = 0x12000, scoped, tag = 'internal scratch']
  %s0 = inlined_call_operand.vmem [shape: f32[2,2,2,9,9,4], index: 0, kind: input, shape index: {}]
  %s1 = inlined_call_operand.vmem [shape: f32[2,2,2,9,9,4], index: 1, kind: input, shape index: {}]
  %s2 = inlined_call_operand.vmem [shape: f32[3,3,4,8], index: 2, kind: input, shape index: {}]
  %s3 = inlined_call_operand.vmem [shape: f32[1,8], index: 3, kind: input, shape index: {}]
  %s4 = inlined_call_operand.hbm [shape: f32[2,8,8,8], index: 4, kind: output, shape index: {}]
  %s5 = sld [smem:[#allocation0]]
  $region139: #{tpu_custom_call.1} parent=0
    _
  %s7 = ssub.s32 1, %s5
  %s8 = scalar_select 0, %s7, %s5
  $region1: #{tpu_custom_call.1} parent=0
    #allocation2 [shape = 'u8[524288]{0}', space=vmem, size = 0x80000, scoped, tag = 'input window, operand 0']
    #allocation3 [shape = 'u8[65536]{0}', space=vmem, size = 0x10000, scoped, tag = 'input window, operand 1']
    #allocation4 [shape = 'u8[65536]{0}', space=vmem, size = 0x10000, scoped, tag = 'output window, operand 0']
    #allocation5 [shape = 's32[2]{0}', space=sflag, size = 0x8, scoped, tag = 'scoped memory for tpu_custom_call.1']
    %9 = vsyncpa [#allocation5], 0
    %s10 = scalar_lea.sflag [#allocation5], 1
    %11 = vsyncpa %s10, 0
    loop: start=0, step=1, limit=4
    $region2: #{tpu_custom_call.1} parent=1 // loop_pre_header
      _
    $region3: #{tpu_custom_call.1} parent=1 // loop_header
      %s13 = sphi 0, %s17
      %p14 = scmp.ge.s32.totalorder %s13, 4
      %s20 = sphi 0, %s39
      %s21 = sphi 0, %s35
      %s22 = sphi 0, %s31
      %s23 = sphi 0, %s20
      %s24 = sphi 0, %s21
      %s25 = sphi 0, %s22
      %s26 = sphi 0, %s23
      %s27 = sphi 0, %s24
      %s28 = sphi 0, %s25
      %s44 = sphi 0, %s46
      %s47 = sphi 0, %s44
      %s48 = sphi 0, %s47
      %s64 = sphi 0, %s48
      %s76 = sphi 0, %s78
      %s79 = sphi 0, %s76
      %s80 = sphi 0, %s79
      %s96 = sphi 0, %s80
      %s102 = sphi 0, %s104
      %s105 = sphi 0, %s102
      %s106 = sphi 0, %s105
      %s122 = sphi 0, %s106
      %s128 = sphi 0, %s130
      %s131 = sphi 0, %s128
      %s132 = sphi 0, %s131
      %s148 = sphi 0, %s132
      %s158 = sphi 0, %s160
      %s161 = sphi 0, %s158
      %s162 = sphi 0, %s161
      %s178 = sphi 0, %s162
    $region4: #{tpu_custom_call.1} parent=1 // loop_header_branch
      %16 = sbr.rel (%p14) target = $region8
    $region5: #{tpu_custom_call.1} parent=1 // loop_body
      %s18 = ssub.s32 %s13, 1
      %s19 = ssub.s32 %s13, 2
      %s29 = sadd.s32 1, %s22
      %p30 = scmp.ge.s32.totalorder %s29, 1
      %s31 = scalar_select %p30, 0, %s29
      %s32 = sadd.s32 1, %s21
      %s33 = scalar_select %p30, %s32, %s21
      %p34 = scmp.ge.s32.totalorder %s33, 1
      %s35 = scalar_select %p34, 0, %s33
      %s36 = sadd.s32 1, %s20
      %s37 = scalar_select %p34, %s36, %s20
      %p38 = scmp.ge.s32.totalorder %s37, 2
      %s39 = scalar_select %p38, 0, %s37
      %s40 = ssub.s32 %s20, %s39
      %s41 = ssub.s32 %s21, %s35
      %s42 = sor.u32 %s40, %s41
      %p43 = scmp.eq.s32.totalorder %s42, 0
      %s45 = sadd.s32 %s44, 1
      %s46 = scalar_select %p43, %s44, %s45
      %p49 = pneg %p43
      %p50 = scmp.eq.s32.totalorder %s13, 1
      %p51 = por %p49, %p50
      %p52 = scmp.ne.s32.totalorder %s44, %s47
      %p53 = scmp.eq.s32.totalorder %s13, 0
      %p54 = por %p52, %p53
      %p55 = scmp.ne.s32.totalorder %s44, %s47
      %p56 = scmp.eq.s32.totalorder %s18, 1
      %p57 = por %p55, %p56
      %p58 = scmp.ne.s32.totalorder %s47, %s48
      %p59 = scmp.eq.s32.totalorder %s18, 0
      %p60 = por %p58, %p59
      %p61 = scmp.ne.s32.totalorder %s47, %s48
      %p62 = scmp.eq.s32.totalorder %s19, 1
      %p63 = por %p61, %p62
      %p65 = scmp.ne.s32.totalorder %s48, %s64
      %p66 = scmp.eq.s32.totalorder %s19, 0
      %p67 = por %p65, %p66
      %s68 = sadd.s32 %s21, 1
      %s69 = smul.u32 %s68, 8
      %s70 = sadd.s32 %s35, 1
      %s71 = smul.u32 %s70, 8
      %s72 = ssub.s32 %s20, %s39
      %s73 = ssub.s32 %s69, %s71
      %s74 = sor.u32 %s72, %s73
      %p75 = scmp.eq.s32.totalorder %s74, 0
      %s77 = sadd.s32 %s76, 1
      %s78 = scalar_select %p75, %s76, %s77
      %p81 = pneg %p75
      %p82 = scmp.eq.s32.totalorder %s13, 1
      %p83 = por %p81, %p82
      %p84 = scmp.ne.s32.totalorder %s76, %s79
      %p85 = scmp.eq.s32.totalorder %s13, 0
      %p86 = por %p84, %p85
      %p87 = scmp.ne.s32.totalorder %s76, %s79
      %p88 = scmp.eq.s32.totalorder %s18, 1
      %p89 = por %p87, %p88
      %p90 = scmp.ne.s32.totalorder %s79, %s80
      %p91 = scmp.eq.s32.totalorder %s18, 0
      %p92 = por %p90, %p91
      %p93 = scmp.ne.s32.totalorder %s79, %s80
      %p94 = scmp.eq.s32.totalorder %s19, 1
      %p95 = por %p93, %p94
      %p97 = scmp.ne.s32.totalorder %s80, %s96
      %p98 = scmp.eq.s32.totalorder %s19, 0
      %p99 = por %p97, %p98
      %s100 = ssub.s32 %s22, %s31
      %p101 = scmp.eq.s32.totalorder %s100, 0
      %s103 = sadd.s32 %s102, 1
      %s104 = scalar_select %p101, %s102, %s103
      %p107 = pneg %p101
      %p108 = scmp.eq.s32.totalorder %s13, 1
      %p109 = por %p107, %p108
      %p110 = scmp.ne.s32.totalorder %s102, %s105
      %p111 = scmp.eq.s32.totalorder %s13, 0
      %p112 = por %p110, %p111
      %p113 = scmp.ne.s32.totalorder %s102, %s105
      %p114 = scmp.eq.s32.totalorder %s18, 1
      %p115 = por %p113, %p114
      %p116 = scmp.ne.s32.totalorder %s105, %s106
      %p117 = scmp.eq.s32.totalorder %s18, 0
      %p118 = por %p116, %p117
      %p119 = scmp.ne.s32.totalorder %s105, %s106
      %p120 = scmp.eq.s32.totalorder %s19, 1
      %p121 = por %p119, %p120
      %p123 = scmp.ne.s32.totalorder %s106, %s122
      %p124 = scmp.eq.s32.totalorder %s19, 0
      %p125 = por %p123, %p124
      %s126 = ssub.s32 %s22, %s31
      %p127 = scmp.eq.s32.totalorder %s126, 0
      %s129 = sadd.s32 %s128, 1
      %s130 = scalar_select %p127, %s128, %s129
      %p133 = pneg %p127
      %p134 = scmp.eq.s32.totalorder %s13, 1
      %p135 = por %p133, %p134
      %p136 = scmp.ne.s32.totalorder %s128, %s131
      %p137 = scmp.eq.s32.totalorder %s13, 0
      %p138 = por %p136, %p137
      %p139 = scmp.ne.s32.totalorder %s128, %s131
      %p140 = scmp.eq.s32.totalorder %s18, 1
      %p141 = por %p139, %p140
      %p142 = scmp.ne.s32.totalorder %s131, %s132
      %p143 = scmp.eq.s32.totalorder %s18, 0
      %p144 = por %p142, %p143
      %p145 = scmp.ne.s32.totalorder %s131, %s132
      %p146 = scmp.eq.s32.totalorder %s19, 1
      %p147 = por %p145, %p146
      %p149 = scmp.ne.s32.totalorder %s132, %s148
      %p150 = scmp.eq.s32.totalorder %s19, 0
      %p151 = por %p149, %p150
      %s152 = ssub.s32 %s20, %s39
      %s153 = ssub.s32 %s21, %s35
      %s154 = sor.u32 %s152, %s153
      %s155 = ssub.s32 %s22, %s31
      %s156 = sor.u32 %s154, %s155
      %p157 = scmp.eq.s32.totalorder %s156, 0
      %s159 = sadd.s32 %s158, 1
      %s160 = scalar_select %p157, %s158, %s159
      %p163 = pneg %p157
      %p164 = scmp.eq.s32.totalorder %s13, 1
      %p165 = por %p163, %p164
      %p166 = scmp.ne.s32.totalorder %s158, %s161
      %p167 = scmp.eq.s32.totalorder %s13, 0
      %p168 = por %p166, %p167
      %p169 = scmp.ne.s32.totalorder %s158, %s161
      %p170 = scmp.eq.s32.totalorder %s18, 1
      %p171 = por %p169, %p170
      %p172 = scmp.ne.s32.totalorder %s161, %s162
      %p173 = scmp.eq.s32.totalorder %s18, 0
      %p174 = por %p172, %p173
      %p175 = scmp.ne.s32.totalorder %s161, %s162
      %p176 = scmp.eq.s32.totalorder %s19, 1
      %p177 = por %p175, %p176
      %p179 = scmp.ne.s32.totalorder %s162, %s178
      %p180 = scmp.eq.s32.totalorder %s19, 0
      %p181 = por %p179, %p180
      %p182 = scmp.le.s32.totalorder 1, %s13
      %p183 = scmp.lt.s32.totalorder %s13, 3
      %p184 = pnand %p182, %p183
      %p185 = pneg %p184
      // Predicated region
      $region9: #{tpu_custom_call.1} parent=5 // pred_check
        _
      $region10: #{tpu_custom_call.1} parent=5 // pred_check_branch
        %187 = sbr.rel (%p184) target = $region12
      $region11: #{tpu_custom_call.1} parent=5 // pred_region
        %s188 = ssub.s32 %s13, 1
        // Predicated region
        $region13: #{tpu_custom_call.1} parent=11 // pred_check
          %p189 = pneg %p118
        $region14: #{tpu_custom_call.1} parent=11 // pred_check_branch
          %191 = sbr.rel (%p189) target = $region16
        $region15: #{tpu_custom_call.1} parent=11 // pred_region
          %p192 = scmp.lt.s32.totalorder %s25, 0
          %s193 = scalar_select %p192, %s25, 0
          %s194 = smul.addr %s193, 4
          %s195 = scalar_lea.vmem %s2, %s194
        $region16: #{tpu_custom_call.1} parent=11 // pred_fallthru
          _
        // Predicated region
        $region17: #{tpu_custom_call.1} parent=11 // pred_check
          %p196 = pneg %p144
        $region18: #{tpu_custom_call.1} parent=11 // pred_check_branch
          %198 = sbr.rel (%p196) target = $region20
        $region19: #{tpu_custom_call.1} parent=11 // pred_region
          %p199 = scmp.lt.s32.totalorder %s25, 0
          %s200 = scalar_select %p199, %s25, 0
          %s201 = scalar_lea.vmem %s3, %s200
        $region20: #{tpu_custom_call.1} parent=11 // pred_fallthru
          _
      $region12: #{tpu_custom_call.1} parent=5 // pred_fallthru
        _
      %p202 = scmp.lt.s32.totalorder %s13, 2
      // Predicated region
      $region21: #{tpu_custom_call.1} parent=5 // pred_check
        %p203 = pneg %p202
      $region22: #{tpu_custom_call.1} parent=5 // pred_check_branch
        %205 = sbr.rel (%p203) target = $region24
      $region23: #{tpu_custom_call.1} parent=5 // pred_region
        // Predicated region
        $region25: #{tpu_custom_call.1} parent=23 // pred_check
          %p206 = pneg %p54
        $region26: #{tpu_custom_call.1} parent=23 // pred_check_branch
          %208 = sbr.rel (%p206) target = $region28
        $region27: #{tpu_custom_call.1} parent=23 // pred_region
          %s209 = sand.u32 %s44, 1
          %s210 = sand.u32 %s44, 1
          %s211 = smul.addr %s210, 512
          %s212 = scalar_lea.vmem [#allocation2], %s211
          %s213 = smul.u32 8, %s21
          %s214 = ssub.s32 9, %s213
          %p215 = scmp.lt.s32.totalorder %s214, 8
          %s216 = scalar_select %p215, %s214, 8
          %s217 = smul.u32 512, %s216
          %s218 = smul.u32 %s217, 2
          %p219 = scmp.ne.s32.totalorder 0, %s218
          %s220 = smul.addr %s213, 2
          %s221 = smul.addr %s20, 72
          %s222 = sadd.s32 %s220, %s221
          %s223 = smul.addr %s222, 8
          %s224 = scalar_lea.vmem %s0, %s223
          %s225 = smul.u32 %s216, 2
          // Predicated region
          $region29: #{tpu_custom_call.1} parent=27 // pred_check
            %p226 = pneg %p219
          $region30: #{tpu_custom_call.1} parent=27 // pred_check_branch
            %228 = sbr.rel (%p226) target = $region32
          $region31: #{tpu_custom_call.1} parent=27 // pred_region
            // Predicated region
            $region33: #{tpu_custom_call.1} parent=31 // pred_check
              _
            $region34: #{tpu_custom_call.1} parent=31 // pred_check_branch
              %230 = sbr.rel (0) target = $region36
            $region35: #{tpu_custom_call.1} parent=31 // pred_region
              // Predicated region
              $region55: #{tpu_custom_call.1} parent=35 // pred_check
                _
              $region56: #{tpu_custom_call.1} parent=35 // pred_check_branch
                %412 = sbr.rel (0) target = $region58
              $region57: #{tpu_custom_call.1} parent=35 // pred_region
                %s413 = sshrl.u32 %s225, 4
                // While loop
                $region59: #{tpu_custom_call.1} parent=57 // loop_pre_header
                  _
                $region60: #{tpu_custom_call.1} parent=57 // loop_header
                  %s415 = sphi 0, %s417
                  %p416 = scmp.ge.s32.totalorder %s415, %s413
                  %s420 = sphi 0, %s553
                  %s421 = sphi %s224, %s556
                  %s422 = sphi %s212, %s557
                $region61: #{tpu_custom_call.1} parent=57 // loop_header_branch
                  %419 = sbr.rel (%p416) target = $region65
                $region62: #{tpu_custom_call.1} parent=57 // loop_body
                  %v423 = vld [vmem:[%s421] sm:$0xff]
                  %424 = vst [vmem:[%s422] sm:$0xff] %v423
                  %v425 = vld [vmem:[%s421 + $0x8] sm:$0xff]
                  %426 = vst [vmem:[%s422 + $0x8] sm:$0xff] %v425
                  %v427 = vld [vmem:[%s421 + $0x10] sm:$0xff]
                  %428 = vst [vmem:[%s422 + $0x10] sm:$0xff] %v427
                  %v429 = vld [vmem:[%s421 + $0x18] sm:$0xff]
                  %430 = vst [vmem:[%s422 + $0x18] sm:$0xff] %v429
                  %v431 = vld [vmem:[%s421 + $0x20] sm:$0xff]
                  %432 = vst [vmem:[%s422 + $0x20] sm:$0xff] %v431
                  %v433 = vld [vmem:[%s421 + $0x28] sm:$0xff]
                  %434 = vst [vmem:[%s422 + $0x28] sm:$0xff] %v433
                  %v435 = vld [vmem:[%s421 + $0x30] sm:$0xff]
                  %436 = vst [vmem:[%s422 + $0x30] sm:$0xff] %v435
                  %v437 = vld [vmem:[%s421 + $0x38] sm:$0xff]
                  %438 = vst [vmem:[%s422 + $0x38] sm:$0xff] %v437
                  %v439 = vld [vmem:[%s421 + $0x40] sm:$0xff]
                  %440 = vst [vmem:[%s422 + $0x40] sm:$0xff] %v439
                  %v441 = vld [vmem:[%s421 + $0x48] sm:$0xff]
                  %442 = vst [vmem:[%s422 + $0x48] sm:$0xff] %v441
                  %v443 = vld [vmem:[%s421 + $0x50] sm:$0xff]
                  %444 = vst [vmem:[%s422 + $0x50] sm:$0xff] %v443
                  %v445 = vld [vmem:[%s421 + $0x58] sm:$0xff]
                  %446 = vst [vmem:[%s422 + $0x58] sm:$0xff] %v445
                  %v447 = vld [vmem:[%s421 + $0x60] sm:$0xff]
                  %448 = vst [vmem:[%s422 + $0x60] sm:$0xff] %v447
                  %v449 = vld [vmem:[%s421 + $0x68] sm:$0xff]
                  %450 = vst [vmem:[%s422 + $0x68] sm:$0xff] %v449
                  %v451 = vld [vmem:[%s421 + $0x70] sm:$0xff]
                  %452 = vst [vmem:[%s422 + $0x70] sm:$0xff] %v451
                  %v453 = vld [vmem:[%s421 + $0x78] sm:$0xff]
                  %454 = vst [vmem:[%s422 + $0x78] sm:$0xff] %v453
                  %v455 = vld [vmem:[%s421 + $0x90] sm:$0xff]
                  %456 = vst [vmem:[%s422 + $0x80] sm:$0xff] %v455
                  %v457 = vld [vmem:[%s421 + $0x98] sm:$0xff]
                  %458 = vst [vmem:[%s422 + $0x88] sm:$0xff] %v457
                  %v459 = vld [vmem:[%s421 + $0xa0] sm:$0xff]
                  %460 = vst [vmem:[%s422 + $0x90] sm:$0xff] %v459
                  %v461 = vld [vmem:[%s421 + $0xa8] sm:$0xff]
                  %462 = vst [vmem:[%s422 + $0x98] sm:$0xff] %v461
                  %v463 = vld [vmem:[%s421 + $0xb0] sm:$0xff]
                  %464 = vst [vmem:[%s422 + $0xa0] sm:$0xff] %v463
                  %v465 = vld [vmem:[%s421 + $0xb8] sm:$0xff]
                  %466 = vst [vmem:[%s422 + $0xa8] sm:$0xff] %v465
                  %v467 = vld [vmem:[%s421 + $0xc0] sm:$0xff]
                  %468 = vst [vmem:[%s422 + $0xb0] sm:$0xff] %v467
                  %v469 = vld [vmem:[%s421 + $0xc8] sm:$0xff]
                  %470 = vst [vmem:[%s422 + $0xb8] sm:$0xff] %v469
                  %v471 = vld [vmem:[%s421 + $0xd0] sm:$0xff]
                  %472 = vst [vmem:[%s422 + $0xc0] sm:$0xff] %v471
                  %v473 = vld [vmem:[%s421 + $0xd8] sm:$0xff]
                  %474 = vst [vmem:[%s422 + $0xc8] sm:$0xff] %v473
                  %v475 = vld [vmem:[%s421 + $0xe0] sm:$0xff]
                  %476 = vst [vmem:[%s422 + $0xd0] sm:$0xff] %v475
                  %v477 = vld [vmem:[%s421 + $0xe8] sm:$0xff]
                  %478 = vst [vmem:[%s422 + $0xd8] sm:$0xff] %v477
                  %v479 = vld [vmem:[%s421 + $0xf0] sm:$0xff]
                  %480 = vst [vmem:[%s422 + $0xe0] sm:$0xff] %v479
                  %v481 = vld [vmem:[%s421 + $0xf8] sm:$0xff]
                  %482 = vst [vmem:[%s422 + $0xe8] sm:$0xff] %v481
                  %v483 = vld [vmem:[%s421 + $0x100] sm:$0xff]
                  %484 = vst [vmem:[%s422 + $0xf0] sm:$0xff] %v483
                  %v485 = vld [vmem:[%s421 + $0x108] sm:$0xff]
                  %486 = vst [vmem:[%s422 + $0xf8] sm:$0xff] %v485
                  %v487 = vld [vmem:[%s421 + $0x120] sm:$0xff]
                  %488 = vst [vmem:[%s422 + $0x100] sm:$0xff] %v487
                  %v489 = vld [vmem:[%s421 + $0x128] sm:$0xff]
                  %490 = vst [vmem:[%s422 + $0x108] sm:$0xff] %v489
                  %v491 = vld [vmem:[%s421 + $0x130] sm:$0xff]
                  %492 = vst [vmem:[%s422 + $0x110] sm:$0xff] %v491
                  %v493 = vld [vmem:[%s421 + $0x138] sm:$0xff]
                  %494 = vst [vmem:[%s422 + $0x118] sm:$0xff] %v493
                  %v495 = vld [vmem:[%s421 + $0x140] sm:$0xff]
                  %496 = vst [vmem:[%s422 + $0x120] sm:$0xff] %v495
                  %v497 = vld [vmem:[%s421 + $0x148] sm:$0xff]
                  %498 = vst [vmem:[%s422 + $0x128] sm:$0xff] %v497
                  %v499 = vld [vmem:[%s421 + $0x150] sm:$0xff]
                  %500 = vst [vmem:[%s422 + $0x130] sm:$0xff] %v499
                  %v501 = vld [vmem:[%s421 + $0x158] sm:$0xff]
                  %502 = vst [vmem:[%s422 + $0x138] sm:$0xff] %v501
                  %v503 = vld [vmem:[%s421 + $0x160] sm:$0xff]
                  %504 = vst [vmem:[%s422 + $0x140] sm:$0xff] %v503
                  %v505 = vld [vmem:[%s421 + $0x168] sm:$0xff]
                  %506 = vst [vmem:[%s422 + $0x148] sm:$0xff] %v505
                  %v507 = vld [vmem:[%s421 + $0x170] sm:$0xff]
                  %508 = vst [vmem:[%s422 + $0x150] sm:$0xff] %v507
                  %v509 = vld [vmem:[%s421 + $0x178] sm:$0xff]
                  %510 = vst [vmem:[%s422 + $0x158] sm:$0xff] %v509
                  %v511 = vld [vmem:[%s421 + $0x180] sm:$0xff]
                  %512 = vst [vmem:[%s422 + $0x160] sm:$0xff] %v511
                  %v513 = vld [vmem:[%s421 + $0x188] sm:$0xff]
                  %514 = vst [vmem:[%s422 + $0x168] sm:$0xff] %v513
                  %v515 = vld [vmem:[%s421 + $0x190] sm:$0xff]
                  %516 = vst [vmem:[%s422 + $0x170] sm:$0xff] %v515
                  %v517 = vld [vmem:[%s421 + $0x198] sm:$0xff]
                  %518 = vst [vmem:[%s422 + $0x178] sm:$0xff] %v517
                  %v519 = vld [vmem:[%s421 + $0x1b0] sm:$0xff]
                  %520 = vst [vmem:[%s422 + $0x180] sm:$0xff] %v519
                  %v521 = vld [vmem:[%s421 + $0x1b8] sm:$0xff]
                  %522 = vst [vmem:[%s422 + $0x188] sm:$0xff] %v521
                  %v523 = vld [vmem:[%s421 + $0x1c0] sm:$0xff]
                  %524 = vst [vmem:[%s422 + $0x190] sm:$0xff] %v523
                  %v525 = vld [vmem:[%s421 + $0x1c8] sm:$0xff]
                  %526 = vst [vmem:[%s422 + $0x198] sm:$0xff] %v525
                  %v527 = vld [vmem:[%s421 + $0x1d0] sm:$0xff]
                  %528 = vst [vmem:[%s422 + $0x1a0] sm:$0xff] %v527
                  %v529 = vld [vmem:[%s421 + $0x1d8] sm:$0xff]
                  %530 = vst [vmem:[%s422 + $0x1a8] sm:$0xff] %v529
                  %v531 = vld [vmem:[%s421 + $0x1e0] sm:$0xff]
                  %532 = vst [vmem:[%s422 + $0x1b0] sm:$0xff] %v531
                  %v533 = vld [vmem:[%s421 + $0x1e8] sm:$0xff]
                  %534 = vst [vmem:[%s422 + $0x1b8] sm:$0xff] %v533
                  %v535 = vld [vmem:[%s421 + $0x1f0] sm:$0xff]
                  %536 = vst [vmem:[%s422 + $0x1c0] sm:$0xff] %v535
                  %v537 = vld [vmem:[%s421 + $0x1f8] sm:$0xff]
                  %538 = vst [vmem:[%s422 + $0x1c8] sm:$0xff] %v537
                  %v539 = vld [vmem:[%s421 + $0x200] sm:$0xff]
                  %540 = vst [vmem:[%s422 + $0x1d0] sm:$0xff] %v539
                  %v541 = vld [vmem:[%s421 + $0x208] sm:$0xff]
                  %542 = vst [vmem:[%s422 + $0x1d8] sm:$0xff] %v541
                  %v543 = vld [vmem:[%s421 + $0x210] sm:$0xff]
                  %544 = vst [vmem:[%s422 + $0x1e0] sm:$0xff] %v543
                  %v545 = vld [vmem:[%s421 + $0x218] sm:$0xff]
                  %546 = vst [vmem:[%s422 + $0x1e8] sm:$0xff] %v545
                  %v547 = vld [vmem:[%s421 + $0x220] sm:$0xff]
                  %548 = vst [vmem:[%s422 + $0x1f0] sm:$0xff] %v547
                  %v549 = vld [vmem:[%s421 + $0x228] sm:$0xff]
                  %550 = vst [vmem:[%s422 + $0x1f8] sm:$0xff] %v549
                  %s551 = sadd.s32 1, %s420
                  %p552 = scmp.ge.s32.totalorder %s551, %s413
                  %s553 = scalar_select %p552, 0, %s551
                  %s554 = smul.u32 %s553, 128
                  %s555 = smul.u32 %s553, 128
                  %s556 = scalar_lea.vmem %s224, %s554
                  %s557 = scalar_lea.vmem %s212, %s555 [#allocation2]
                $region63: #{tpu_custom_call.1} parent=57 // loop_footer
                  %s417 = sadd.s32 %s415, 1
                $region64: #{tpu_custom_call.1} parent=57 // loop_footer_branch
                  %414 = sbr.rel target = $region60
                $region65: #{tpu_custom_call.1} parent=57 // loop_exit
                  _
                %s558 = sshrl.u32 %s225, 4
                %s559 = sand.u32 %s225, 15
                %s560 = smul.u32 %s558, 16
                %s561 = smul.u32 8, %s560
                %s562 = scalar_lea.vmem %s224, %s561
                %s563 = smul.u32 8, %s560
                %s564 = scalar_lea.vmem %s212, %s563 [#allocation2]
                // While loop
                $region66: #{tpu_custom_call.1} parent=57 // loop_pre_header
                  _
                $region67: #{tpu_custom_call.1} parent=57 // loop_header
                  %s566 = sphi 0, %s568
                  %p567 = scmp.ge.s32.totalorder %s566, %s559
                  %s571 = sphi 0, %s584
                  %s572 = sphi %s562, %s587
                  %s573 = sphi %s564, %s588
                $region68: #{tpu_custom_call.1} parent=57 // loop_header_branch
                  %570 = sbr.rel (%p567) target = $region72
                $region69: #{tpu_custom_call.1} parent=57 // loop_body
                  %v574 = vld [vmem:[%s572] sm:$0xff]
                  %575 = vst [vmem:[%s573] sm:$0xff] %v574
                  %v576 = vld [vmem:[%s572 + $0x90] sm:$0xff]
                  %577 = vst [vmem:[%s573 + $0x80] sm:$0xff] %v576
                  %v578 = vld [vmem:[%s572 + $0x120] sm:$0xff]
                  %579 = vst [vmem:[%s573 + $0x100] sm:$0xff] %v578
                  %v580 = vld [vmem:[%s572 + $0x1b0] sm:$0xff]
                  %581 = vst [vmem:[%s573 + $0x180] sm:$0xff] %v580
                  %s582 = sadd.s32 1, %s571
                  %p583 = scmp.ge.s32.totalorder %s582, %s559
                  %s584 = scalar_select %p583, 0, %s582
                  %s585 = smul.u32 %s584, 8
                  %s586 = smul.u32 %s584, 8
                  %s587 = scalar_lea.vmem %s562, %s585
                  %s588 = scalar_lea.vmem %s564, %s586 [#allocation2]
                $region70: #{tpu_custom_call.1} parent=57 // loop_footer
                  %s568 = sadd.s32 %s566, 1
                $region71: #{tpu_custom_call.1} parent=57 // loop_footer_branch
                  %565 = sbr.rel target = $region67
                $region72: #{tpu_custom_call.1} parent=57 // loop_exit
                  _
              $region58: #{tpu_custom_call.1} parent=35 // pred_fallthru
                _
              // Predicated region
              $region73: #{tpu_custom_call.1} parent=35 // pred_check
                _
              $region74: #{tpu_custom_call.1} parent=35 // pred_check_branch
                %590 = sbr.rel target = $region76
              $region75: #{tpu_custom_call.1} parent=35 // pred_region
                _
              $region76: #{tpu_custom_call.1} parent=35 // pred_fallthru
                _
            $region36: #{tpu_custom_call.1} parent=31 // pred_fallthru
              _
            // Predicated region
            $region37: #{tpu_custom_call.1} parent=31 // pred_check
              _
            $region38: #{tpu_custom_call.1} parent=31 // pred_check_branch
              %232 = sbr.rel target = $region40
            $region39: #{tpu_custom_call.1} parent=31 // pred_region
              %s234 = ssub.s32 256, 1
              %s235 = sshrl.u32 %s225, 4
              // While loop
              $region41: #{tpu_custom_call.1} parent=39 // loop_pre_header
                _
              $region42: #{tpu_custom_call.1} parent=39 // loop_header
                %s237 = sphi 0, %s239
                %p238 = scmp.ge.s32.totalorder %s237, %s235
                %s242 = sphi 0, %s375
                %s243 = sphi %s224, %s378
                %s244 = sphi %s212, %s379
              $region43: #{tpu_custom_call.1} parent=39 // loop_header_branch
                %241 = sbr.rel (%p238) target = $region47
              $region44: #{tpu_custom_call.1} parent=39 // loop_body
                %v245 = vld [vmem:[%s243] sm:%s234]
                %246 = vst [vmem:[%s244] sm:%s234] %v245
                %v247 = vld [vmem:[%s243 + $0x8] sm:%s234]
                %248 = vst [vmem:[%s244 + $0x8] sm:%s234] %v247
                %v249 = vld [vmem:[%s243 + $0x10] sm:%s234]
                %250 = vst [vmem:[%s244 + $0x10] sm:%s234] %v249
                %v251 = vld [vmem:[%s243 + $0x18] sm:%s234]
                %252 = vst [vmem:[%s244 + $0x18] sm:%s234] %v251
                %v253 = vld [vmem:[%s243 + $0x20] sm:%s234]
                %254 = vst [vmem:[%s244 + $0x20] sm:%s234] %v253
                %v255 = vld [vmem:[%s243 + $0x28] sm:%s234]
                %256 = vst [vmem:[%s244 + $0x28] sm:%s234] %v255
                %v257 = vld [vmem:[%s243 + $0x30] sm:%s234]
                %258 = vst [vmem:[%s244 + $0x30] sm:%s234] %v257
                %v259 = vld [vmem:[%s243 + $0x38] sm:%s234]
                %260 = vst [vmem:[%s244 + $0x38] sm:%s234] %v259
                %v261 = vld [vmem:[%s243 + $0x40] sm:%s234]
                %262 = vst [vmem:[%s244 + $0x40] sm:%s234] %v261
                %v263 = vld [vmem:[%s243 + $0x48] sm:%s234]
                %264 = vst [vmem:[%s244 + $0x48] sm:%s234] %v263
                %v265 = vld [vmem:[%s243 + $0x50] sm:%s234]
                %266 = vst [vmem:[%s244 + $0x50] sm:%s234] %v265
                %v267 = vld [vmem:[%s243 + $0x58] sm:%s234]
                %268 = vst [vmem:[%s244 + $0x58] sm:%s234] %v267
                %v269 = vld [vmem:[%s243 + $0x60] sm:%s234]
                %270 = vst [vmem:[%s244 + $0x60] sm:%s234] %v269
                %v271 = vld [vmem:[%s243 + $0x68] sm:%s234]
                %272 = vst [vmem:[%s244 + $0x68] sm:%s234] %v271
                %v273 = vld [vmem:[%s243 + $0x70] sm:%s234]
                %274 = vst [vmem:[%s244 + $0x70] sm:%s234] %v273
                %v275 = vld [vmem:[%s243 + $0x78] sm:%s234]
                %276 = vst [vmem:[%s244 + $0x78] sm:%s234] %v275
                %v277 = vld [vmem:[%s243 + $0x90] sm:%s234]
                %278 = vst [vmem:[%s244 + $0x80] sm:%s234] %v277
                %v279 = vld [vmem:[%s243 + $0x98] sm:%s234]
                %280 = vst [vmem:[%s244 + $0x88] sm:%s234] %v279
                %v281 = vld [vmem:[%s243 + $0xa0] sm:%s234]
                %282 = vst [vmem:[%s244 + $0x90] sm:%s234] %v281
                %v283 = vld [vmem:[%s243 + $0xa8] sm:%s234]
                %284 = vst [vmem:[%s244 + $0x98] sm:%s234] %v283
                %v285 = vld [vmem:[%s243 + $0xb0] sm:%s234]
                %286 = vst [vmem:[%s244 + $0xa0] sm:%s234] %v285
                %v287 = vld [vmem:[%s243 + $0xb8] sm:%s234]
                %288 = vst [vmem:[%s244 + $0xa8] sm:%s234] %v287
                %v289 = vld [vmem:[%s243 + $0xc0] sm:%s234]
                %290 = vst [vmem:[%s244 + $0xb0] sm:%s234] %v289
                %v291 = vld [vmem:[%s243 + $0xc8] sm:%s234]
                %292 = vst [vmem:[%s244 + $0xb8] sm:%s234] %v291
                %v293 = vld [vmem:[%s243 + $0xd0] sm:%s234]
                %294 = vst [vmem:[%s244 + $0xc0] sm:%s234] %v293
                %v295 = vld [vmem:[%s243 + $0xd8] sm:%s234]
                %296 = vst [vmem:[%s244 + $0xc8] sm:%s234] %v295
                %v297 = vld [vmem:[%s243 + $0xe0] sm:%s234]
                %298 = vst [vmem:[%s244 + $0xd0] sm:%s234] %v297
                %v299 = vld [vmem:[%s243 + $0xe8] sm:%s234]
                %300 = vst [vmem:[%s244 + $0xd8] sm:%s234] %v299
                %v301 = vld [vmem:[%s243 + $0xf0] sm:%s234]
                %302 = vst [vmem:[%s244 + $0xe0] sm:%s234] %v301
                %v303 = vld [vmem:[%s243 + $0xf8] sm:%s234]
                %304 = vst [vmem:[%s244 + $0xe8] sm:%s234] %v303
                %v305 = vld [vmem:[%s243 + $0x100] sm:%s234]
                %306 = vst [vmem:[%s244 + $0xf0] sm:%s234] %v305
                %v307 = vld [vmem:[%s243 + $0x108] sm:%s234]
                %308 = vst [vmem:[%s244 + $0xf8] sm:%s234] %v307
                %v309 = vld [vmem:[%s243 + $0x120] sm:%s234]
                %310 = vst [vmem:[%s244 + $0x100] sm:%s234] %v309
                %v311 = vld [vmem:[%s243 + $0x128] sm:%s234]
                %312 = vst [vmem:[%s244 + $0x108] sm:%s234] %v311
                %v313 = vld [vmem:[%s243 + $0x130] sm:%s234]
                %314 = vst [vmem:[%s244 + $0x110] sm:%s234] %v313
                %v315 = vld [vmem:[%s243 + $0x138] sm:%s234]
                %316 = vst [vmem:[%s244 + $0x118] sm:%s234] %v315
                %v317 = vld [vmem:[%s243 + $0x140] sm:%s234]
                %318 = vst [vmem:[%s244 + $0x120] sm:%s234] %v317
                %v319 = vld [vmem:[%s243 + $0x148] sm:%s234]
                %320 = vst [vmem:[%s244 + $0x128] sm:%s234] %v319
                %v321 = vld [vmem:[%s243 + $0x150] sm:%s234]
                %322 = vst [vmem:[%s244 + $0x130] sm:%s234] %v321
                %v323 = vld [vmem:[%s243 + $0x158] sm:%s234]
                %324 = vst [vmem:[%s244 + $0x138] sm:%s234] %v323
                %v325 = vld [vmem:[%s243 + $0x160] sm:%s234]
                %326 = vst [vmem:[%s244 + $0x140] sm:%s234] %v325
                %v327 = vld [vmem:[%s243 + $0x168] sm:%s234]
                %328 = vst [vmem:[%s244 + $0x148] sm:%s234] %v327
                %v329 = vld [vmem:[%s243 + $0x170] sm:%s234]
                %330 = vst [vmem:[%s244 + $0x150] sm:%s234] %v329
                %v331 = vld [vmem:[%s243 + $0x178] sm:%s234]
                %332 = vst [vmem:[%s244 + $0x158] sm:%s234] %v331
                %v333 = vld [vmem:[%s243 + $0x180] sm:%s234]
                %334 = vst [vmem:[%s244 + $0x160] sm:%s234] %v333
                %v335 = vld [vmem:[%s243 + $0x188] sm:%s234]
                %336 = vst [vmem:[%s244 + $0x168] sm:%s234] %v335
                %v337 = vld [vmem:[%s243 + $0x190] sm:%s234]
                %338 = vst [vmem:[%s244 + $0x170] sm:%s234] %v337
                %v339 = vld [vmem:[%s243 + $0x198] sm:%s234]
                %340 = vst [vmem:[%s244 + $0x178] sm:%s234] %v339
                %v341 = vld [vmem:[%s243 + $0x1b0] sm:%s234]
                %342 = vst [vmem:[%s244 + $0x180] sm:%s234] %v341
                %v343 = vld [vmem:[%s243 + $0x1b8] sm:%s234]
                %344 = vst [vmem:[%s244 + $0x188] sm:%s234] %v343
                %v345 = vld [vmem:[%s243 + $0x1c0] sm:%s234]
                %346 = vst [vmem:[%s244 + $0x190] sm:%s234] %v345
                %v347 = vld [vmem:[%s243 + $0x1c8] sm:%s234]
                %348 = vst [vmem:[%s244 + $0x198] sm:%s234] %v347
                %v349 = vld [vmem:[%s243 + $0x1d0] sm:%s234]
                %350 = vst [vmem:[%s244 + $0x1a0] sm:%s234] %v349
                %v351 = vld [vmem:[%s243 + $0x1d8] sm:%s234]
                %352 = vst [vmem:[%s244 + $0x1a8] sm:%s234] %v351
                %v353 = vld [vmem:[%s243 + $0x1e0] sm:%s234]
                %354 = vst [vmem:[%s244 + $0x1b0] sm:%s234] %v353
                %v355 = vld [vmem:[%s243 + $0x1e8] sm:%s234]
                %356 = vst [vmem:[%s244 + $0x1b8] sm:%s234] %v355
                %v357 = vld [vmem:[%s243 + $0x1f0] sm:%s234]
                %358 = vst [vmem:[%s244 + $0x1c0] sm:%s234] %v357
                %v359 = vld [vmem:[%s243 + $0x1f8] sm:%s234]
                %360 = vst [vmem:[%s244 + $0x1c8] sm:%s234] %v359
                %v361 = vld [vmem:[%s243 + $0x200] sm:%s234]
                %362 = vst [vmem:[%s244 + $0x1d0] sm:%s234] %v361
                %v363 = vld [vmem:[%s243 + $0x208] sm:%s234]
                %364 = vst [vmem:[%s244 + $0x1d8] sm:%s234] %v363
                %v365 = vld [vmem:[%s243 + $0x210] sm:%s234]
                %366 = vst [vmem:[%s244 + $0x1e0] sm:%s234] %v365
                %v367 = vld [vmem:[%s243 + $0x218] sm:%s234]
                %368 = vst [vmem:[%s244 + $0x1e8] sm:%s234] %v367
                %v369 = vld [vmem:[%s243 + $0x220] sm:%s234]
                %370 = vst [vmem:[%s244 + $0x1f0] sm:%s234] %v369
                %v371 = vld [vmem:[%s243 + $0x228] sm:%s234]
                %372 = vst [vmem:[%s244 + $0x1f8] sm:%s234] %v371
                %s373 = sadd.s32 1, %s242
                %p374 = scmp.ge.s32.totalorder %s373, %s235
                %s375 = scalar_select %p374, 0, %s373
                %s376 = smul.u32 %s375, 128
                %s377 = smul.u32 %s375, 128
                %s378 = scalar_lea.vmem %s224, %s376
                %s379 = scalar_lea.vmem %s212, %s377 [#allocation2]
              $region45: #{tpu_custom_call.1} parent=39 // loop_footer
                %s239 = sadd.s32 %s237, 1
              $region46: #{tpu_custom_call.1} parent=39 // loop_footer_branch
                %236 = sbr.rel target = $region42
              $region47: #{tpu_custom_call.1} parent=39 // loop_exit
                _
              %s380 = sshrl.u32 %s225, 4
              %s381 = sand.u32 %s225, 15
              %s382 = smul.u32 %s380, 16
              %s383 = smul.u32 8, %s382
              %s384 = scalar_lea.vmem %s224, %s383
              %s385 = smul.u32 8, %s382
              %s386 = scalar_lea.vmem %s212, %s385 [#allocation2]
              // While loop
              $region48: #{tpu_custom_call.1} parent=39 // loop_pre_header
                _
              $region49: #{tpu_custom_call.1} parent=39 // loop_header
                %s388 = sphi 0, %s390
                %p389 = scmp.ge.s32.totalorder %s388, %s381
                %s393 = sphi 0, %s406
                %s394 = sphi %s384, %s409
                %s395 = sphi %s386, %s410
              $region50: #{tpu_custom_call.1} parent=39 // loop_header_branch
                %392 = sbr.rel (%p389) target = $region54
              $region51: #{tpu_custom_call.1} parent=39 // loop_body
                %v396 = vld [vmem:[%s394] sm:%s234]
                %397 = vst [vmem:[%s395] sm:%s234] %v396
                %v398 = vld [vmem:[%s394 + $0x90] sm:%s234]
                %399 = vst [vmem:[%s395 + $0x80] sm:%s234] %v398
                %v400 = vld [vmem:[%s394 + $0x120] sm:%s234]
                %401 = vst [vmem:[%s395 + $0x100] sm:%s234] %v400
                %v402 = vld [vmem:[%s394 + $0x1b0] sm:%s234]
                %403 = vst [vmem:[%s395 + $0x180] sm:%s234] %v402
                %s404 = sadd.s32 1, %s393
                %p405 = scmp.ge.s32.totalorder %s404, %s381
                %s406 = scalar_select %p405, 0, %s404
                %s407 = smul.u32 %s406, 8
                %s408 = smul.u32 %s406, 8
                %s409 = scalar_lea.vmem %s384, %s407
                %s410 = scalar_lea.vmem %s386, %s408 [#allocation2]
              $region52: #{tpu_custom_call.1} parent=39 // loop_footer
                %s390 = sadd.s32 %s388, 1
              $region53: #{tpu_custom_call.1} parent=39 // loop_footer_branch
                %387 = sbr.rel target = $region49
              $region54: #{tpu_custom_call.1} parent=39 // loop_exit
                _
            $region40: #{tpu_custom_call.1} parent=31 // pred_fallthru
              _
          $region32: #{tpu_custom_call.1} parent=27 // pred_fallthru
            _
          %591 = vnop
        $region28: #{tpu_custom_call.1} parent=23 // pred_fallthru
          _
        // Predicated region
        $region77: #{tpu_custom_call.1} parent=23 // pred_check
          %p592 = pneg %p86
        $region78: #{tpu_custom_call.1} parent=23 // pred_check_branch
          %594 = sbr.rel (%p592) target = $region80
        $region79: #{tpu_custom_call.1} parent=23 // pred_region
          %s595 = sand.u32 %s76, 1
          %s596 = sand.u32 %s76, 1
          %s597 = smul.addr %s596, 64
          %s598 = scalar_lea.vmem [#allocation3], %s597
          %s599 = sadd.s32 %s21, 1
          %s600 = smul.u32 %s599, 8
          %s601 = smul.addr %s600, 2
          %s602 = smul.addr %s20, 72
          %s603 = sadd.s32 %s601, %s602
          %s604 = smul.addr %s603, 8
          %s605 = scalar_lea.vmem %s1, %s604
          // Predicated region
          $region81: #{tpu_custom_call.1} parent=79 // pred_check
            _
          $region82: #{tpu_custom_call.1} parent=79 // pred_check_branch
            %607 = sbr.rel (0) target = $region84
          $region83: #{tpu_custom_call.1} parent=79 // pred_region
            // Predicated region
            $region85: #{tpu_custom_call.1} parent=83 // pred_check
              _
            $region86: #{tpu_custom_call.1} parent=83 // pred_check_branch
              %609 = sbr.rel (0) target = $region88
            $region87: #{tpu_custom_call.1} parent=83 // pred_region
              // Predicated region
              $region100: #{tpu_custom_call.1} parent=87 // pred_check
                _
              $region101: #{tpu_custom_call.1} parent=87 // pred_check_branch
                %639 = sbr.rel (0) target = $region103
              $region102: #{tpu_custom_call.1} parent=87 // pred_region
                loop: start=0, step=1, limit=1
                $region104: #{tpu_custom_call.1} parent=102 // loop_pre_header
                  _
                $region105: #{tpu_custom_call.1} parent=102 // loop_header
                  %s641 = sphi 0, %s645
                  %p642 = scmp.ge.s32.totalorder %s641, 1
                  %s646 = sphi %s605, %s605
                  %s647 = sphi %s598, %s598
                $region106: #{tpu_custom_call.1} parent=102 // loop_header_branch
                  %644 = sbr.rel (%p642) target = $region110
                $region107: #{tpu_custom_call.1} parent=102 // loop_body
                  %v648 = vld [vmem:[%s646] sm:$0xff]
                  %649 = vst [vmem:[%s647] sm:$0xff] %v648
                  %v650 = vld [vmem:[%s646 + $0x8] sm:$0xff]
                  %651 = vst [vmem:[%s647 + $0x8] sm:$0xff] %v650
                  %v652 = vld [vmem:[%s646 + $0x90] sm:$0xff]
                  %653 = vst [vmem:[%s647 + $0x10] sm:$0xff] %v652
                  %v654 = vld [vmem:[%s646 + $0x98] sm:$0xff]
                  %655 = vst [vmem:[%s647 + $0x18] sm:$0xff] %v654
                  %v656 = vld [vmem:[%s646 + $0x120] sm:$0xff]
                  %657 = vst [vmem:[%s647 + $0x20] sm:$0xff] %v656
                  %v658 = vld [vmem:[%s646 + $0x128] sm:$0xff]
                  %659 = vst [vmem:[%s647 + $0x28] sm:$0xff] %v658
                  %v660 = vld [vmem:[%s646 + $0x1b0] sm:$0xff]
                  %661 = vst [vmem:[%s647 + $0x30] sm:$0xff] %v660
                  %v662 = vld [vmem:[%s646 + $0x1b8] sm:$0xff]
                  %663 = vst [vmem:[%s647 + $0x38] sm:$0xff] %v662
                $region108: #{tpu_custom_call.1} parent=102 // loop_footer
                  %s645 = sadd.s32 1, %s641
                $region109: #{tpu_custom_call.1} parent=102 // loop_footer_branch
                  %640 = sbr.rel target = $region105
                $region110: #{tpu_custom_call.1} parent=102 // loop_exit
                  _
              $region103: #{tpu_custom_call.1} parent=87 // pred_fallthru
                _
              // Predicated region
              $region111: #{tpu_custom_call.1} parent=87 // pred_check
                _
              $region112: #{tpu_custom_call.1} parent=87 // pred_check_branch
                %665 = sbr.rel target = $region114
              $region113: #{tpu_custom_call.1} parent=87 // pred_region
                _
              $region114: #{tpu_custom_call.1} parent=87 // pred_fallthru
                _
            $region88: #{tpu_custom_call.1} parent=83 // pred_fallthru
              _
            // Predicated region
            $region89: #{tpu_custom_call.1} parent=83 // pred_check
              _
            $region90: #{tpu_custom_call.1} parent=83 // pred_check_branch
              %611 = sbr.rel target = $region92
            $region91: #{tpu_custom_call.1} parent=83 // pred_region
              %s613 = ssub.s32 256, 1
              loop: start=0, step=1, limit=1
              $region93: #{tpu_custom_call.1} parent=91 // loop_pre_header
                _
              $region94: #{tpu_custom_call.1} parent=91 // loop_header
                %s615 = sphi 0, %s619
                %p616 = scmp.ge.s32.totalorder %s615, 1
                %s620 = sphi %s605, %s605
                %s621 = sphi %s598, %s598
              $region95: #{tpu_custom_call.1} parent=91 // loop_header_branch
                %618 = sbr.rel (%p616) target = $region99
              $region96: #{tpu_custom_call.1} parent=91 // loop_body
                %v622 = vld [vmem:[%s620] sm:%s613]
                %623 = vst [vmem:[%s621] sm:%s613] %v622
                %v624 = vld [vmem:[%s620 + $0x8] sm:%s613]
                %625 = vst [vmem:[%s621 + $0x8] sm:%s613] %v624
                %v626 = vld [vmem:[%s620 + $0x90] sm:%s613]
                %627 = vst [vmem:[%s621 + $0x10] sm:%s613] %v626
                %v628 = vld [vmem:[%s620 + $0x98] sm:%s613]
                %629 = vst [vmem:[%s621 + $0x18] sm:%s613] %v628
                %v630 = vld [vmem:[%s620 + $0x120] sm:%s613]
                %631 = vst [vmem:[%s621 + $0x20] sm:%s613] %v630
                %v632 = vld [vmem:[%s620 + $0x128] sm:%s613]
                %633 = vst [vmem:[%s621 + $0x28] sm:%s613] %v632
                %v634 = vld [vmem:[%s620 + $0x1b0] sm:%s613]
                %635 = vst [vmem:[%s621 + $0x30] sm:%s613] %v634
                %v636 = vld [vmem:[%s620 + $0x1b8] sm:%s613]
                %637 = vst [vmem:[%s621 + $0x38] sm:%s613] %v636
              $region97: #{tpu_custom_call.1} parent=91 // loop_footer
                %s619 = sadd.s32 1, %s615
              $region98: #{tpu_custom_call.1} parent=91 // loop_footer_branch
                %614 = sbr.rel target = $region94
              $region99: #{tpu_custom_call.1} parent=91 // loop_exit
                _
            $region92: #{tpu_custom_call.1} parent=83 // pred_fallthru
              _
          $region84: #{tpu_custom_call.1} parent=79 // pred_fallthru
            _
          %666 = vnop
        $region80: #{tpu_custom_call.1} parent=23 // pred_fallthru
          _
      $region24: #{tpu_custom_call.1} parent=5 // pred_fallthru
        _
      %p667 = scmp.le.s32.totalorder 1, %s13
      %p668 = scmp.lt.s32.totalorder %s13, 3
      %p669 = pnand %p667, %p668
      %p670 = pneg %p669
      // Predicated region
      $region115: #{tpu_custom_call.1} parent=5 // pred_check
        _
      $region116: #{tpu_custom_call.1} parent=5 // pred_check_branch
        %672 = sbr.rel (%p669) target = $region118
      $region117: #{tpu_custom_call.1} parent=5 // pred_region
        %s673 = ssub.s32 %s13, 1
        %s674 = sand.u32 %s47, 1
        %s675 = sand.u32 %s47, 1
        %s676 = smul.addr %s675, 512
        %s677 = scalar_lea.vmem [#allocation2], %s676
        // Predicated region
        $region119: #{tpu_custom_call.1} parent=117 // pred_check
          %p678 = pneg %p60
        $region120: #{tpu_custom_call.1} parent=117 // pred_check_branch
          %680 = sbr.rel (%p678) target = $region122
        $region121: #{tpu_custom_call.1} parent=117 // pred_region
          _
        $region122: #{tpu_custom_call.1} parent=117 // pred_fallthru
          _
        %s681 = sand.u32 %s79, 1
        %s682 = sand.u32 %s79, 1
        %s683 = smul.addr %s682, 64
        %s684 = scalar_lea.vmem [#allocation3], %s683
        // Predicated region
        $region123: #{tpu_custom_call.1} parent=117 // pred_check
          %p685 = pneg %p92
        $region124: #{tpu_custom_call.1} parent=117 // pred_check_branch
          %687 = sbr.rel (%p685) target = $region126
        $region125: #{tpu_custom_call.1} parent=117 // pred_region
          _
        $region126: #{tpu_custom_call.1} parent=117 // pred_fallthru
          _
        %s688 = sand.u32 %s47, 1
        %s689 = sand.u32 %s47, 1
        %s690 = smul.addr %s689, 512
        %s691 = scalar_lea.vmem [#allocation2], %s690
        %p692 = pneg %p60
        %p693 = pneg %p57
        %s694 = sand.u32 %s79, 1
        %s695 = sand.u32 %s79, 1
        %s696 = smul.addr %s695, 64
        %s697 = scalar_lea.vmem [#allocation3], %s696
        %p698 = pneg %p92
        %p699 = pneg %p89
        %p700 = scmp.lt.s32.totalorder %s25, 0
        %s701 = scalar_select %p700, %s25, 0
        %s702 = smul.addr %s701, 4
        %s703 = scalar_lea.vmem %s2, %s702
        %p704 = pneg %p118
        %p705 = pneg %p115
        %p706 = scmp.lt.s32.totalorder %s25, 0
        %s707 = scalar_select %p706, %s25, 0
        %s708 = scalar_lea.vmem %s3, %s707
        %p709 = pneg %p144
        %p710 = pneg %p141
        %p711 = pneg %p174
        %p712 = pneg %p171
        %s713 = sand.u32 %s161, 1
        %s714 = scalar_lea.sflag [#allocation5], %s713
        %s715 = sand.u32 %s161, 1
        %s716 = smul.addr %s715, 64
        %s717 = scalar_lea.vmem [#allocation4], %s716
        %s718 = smul.u32 8, %s24
        %s719 = ssub.s32 9, %s718
        %p720 = scmp.lt.s32.totalorder %s719, 8
        %s721 = scalar_select %p720, %s719, 8
        %s722 = smul.u32 512, %s721
        %s723 = smul.u32 %s722, 2
        %s724 = sadd.s32 %s24, 1
        %s725 = smul.u32 %s724, 8
        %p726 = scmp.lt.s32.totalorder %s25, 0
        %s727 = scalar_select %p726, %s25, 0
        %s728 = smul.addr %s727, 4
        %s729 = scalar_lea.vmem %s2, %s728
        %p730 = scmp.lt.s32.totalorder %s25, 0
        %s731 = scalar_select %p730, %s25, 0
        %s732 = scalar_lea.vmem %s3, %s731
        %s733 = smul.u32 8, %s24
        %v734 = vld [vmem:[%s729] sm:$0xf]
        %v735 = vld [vmem:[%s677] sm:$0xff]
        %v736 = vld [vmem:[%s677 + $0x10] sm:$0xff]
        %v737 = vld [vmem:[%s677 + $0x20] sm:$0xff]
        %v738 = vld [vmem:[%s677 + $0x30] sm:$0xff]
        %v739 = vld [vmem:[%s677 + $0x40] sm:$0xff]
        %v740 = vld [vmem:[%s677 + $0x50] sm:$0xff]
        %v741 = vld [vmem:[%s677 + $0x60] sm:$0xff]
        %v742 = vld [vmem:[%s677 + $0x70] sm:$0xff]
        %s743 = scalar_lea.vmem %s729, 4
        %v744 = vld [vmem:[%s743] sm:$0xf]
        %s745 = scalar_lea.vmem %s677, 128 [#allocation2]
        %v746 = vld [vmem:[%s745] sm:$0xff]
        %v747 = vld [vmem:[%s745 + $0x10] sm:$0xff]
        %v748 = vld [vmem:[%s745 + $0x20] sm:$0xff]
        %v749 = vld [vmem:[%s745 + $0x30] sm:$0xff]
        %v750 = vld [vmem:[%s745 + $0x40] sm:$0xff]
        %v751 = vld [vmem:[%s745 + $0x50] sm:$0xff]
        %v752 = vld [vmem:[%s745 + $0x60] sm:$0xff]
        %v753 = vld [vmem:[%s745 + $0x70] sm:$0xff]
        %vm754 = vcmask 31744
        %v756 = vsel %vm754, %v746, 0
        %v759 = vsel %vm754, %v747, 0
        %v762 = vsel %vm754, %v748, 0
        %v765 = vsel %vm754, %v749, 0
        %v768 = vsel %vm754, %v750, 0
        %v771 = vsel %vm754, %v751, 0
        %v774 = vsel %vm754, %v752, 0
        %v777 = vsel %vm754, %v753, 0
        %vm779 = vcmask 1043456
        %v781 = vsel %vm779, %v744, 0
        %783 = vmatprep.subr.mxu0 0.0
        %784 = vmatpush1.msra.mxu0 0.0
        %785 = vmatprep.subr.mxu0 0.0
        %786 = vmatpush1.msra.mxu0 0.0
        %787 = vmatprep.subr.mxu0 0.0
        %788 = vmatpush1.msra.mxu0 0.0
        %789 = vmatprep.subr.mxu0 0.0
        %790 = vmatpush1.msra.mxu0 0.0
        %791 = vmatprep.subr.mxu0 0.0
        %792 = vmatpush1.msra.mxu0 0.0
        %793 = vmatprep.subr.mxu0 0.0
        %794 = vmatpush1.msra.mxu0 0.0
        %795 = vmatprep.subr.mxu0 0.0
        %796 = vmatpush1.msra.mxu0 0.0
        %797 = vmatprep.subr.mxu0 0.0
        %798 = vmatpush1.msra.mxu0 0.0
        %799 = vmatprep.subr.mxu0 0.0
        %800 = vmatpush1.msra.mxu0 0.0
        %801 = vmatprep.subr.mxu0 0.0
        %802 = vmatpush1.msra.mxu0 0.0
        %803 = vmatprep.subr.mxu0 0.0
        %804 = vmatpush1.msra.mxu0 0.0
        %805 = vmatprep.subr.mxu0 0.0
        %806 = vmatpush1.msra.mxu0 0.0
        %807 = vmatprep.subr.mxu0 0.0
        %808 = vmatpush1.msra.mxu0 0.0
        %809 = vmatprep.subr.mxu0 0.0
        %810 = vmatpush1.msra.mxu0 0.0
        %811 = vmatprep.subr.mxu0 0.0
        %812 = vmatpush1.msra.mxu0 0.0
        %813 = vmatprep.subr.mxu0 0.0
        %814 = vmatpush1.msra.mxu0 %v781
        %815 = vmatprep.subr.mxu0 0.0
        %816 = vmatpush2.msra.mxu0 0.0
        %817 = vmatprep.subr.mxu0 0.0
        %818 = vmatpush2.msra.mxu0 0.0
        %819 = vmatprep.subr.mxu0 0.0
        %820 = vmatpush2.msra.mxu0 0.0
        %821 = vmatprep.subr.mxu0 0.0
        %822 = vmatpush2.msra.mxu0 0.0
        %823 = vmatprep.subr.mxu0 0.0
        %824 = vmatpush2.msra.mxu0 0.0
        %825 = vmatprep.subr.mxu0 0.0
        %826 = vmatpush2.msra.mxu0 0.0
        %827 = vmatprep.subr.mxu0 0.0
        %828 = vmatpush2.msra.mxu0 0.0
        %829 = vmatprep.subr.mxu0 0.0
        %830 = vmatpush2.msra.mxu0 0.0
        %831 = vmatprep.subr.mxu0 0.0
        %832 = vmatpush2.msra.mxu0 0.0
        %833 = vmatprep.subr.mxu0 0.0
        %834 = vmatpush2.msra.mxu0 0.0
        %835 = vmatprep.subr.mxu0 0.0
        %836 = vmatpush2.msra.mxu0 0.0
        %837 = vmatprep.subr.mxu0 0.0
        %838 = vmatpush2.msra.mxu0 0.0
        %839 = vmatprep.subr.mxu0 0.0
        %840 = vmatpush2.msra.mxu0 0.0
        %841 = vmatprep.subr.mxu0 0.0
        %842 = vmatpush2.msra.mxu0 0.0
        %843 = vmatprep.subr.mxu0 0.0
        %844 = vmatpush2.msra.mxu0 0.0
        %845 = vmatprep.subr.mxu0 0.0
        %846 = vmatpush2.msra.mxu0 0.0
        %847 = vmatprep.mubr.f32.mxu0 0.0
        %848 = vmatmul.mubr.f32.gmra.mxu0 %v756
        %v849 = vpop.f32.mrf.mxu0
        %v850 = vadd.f32 0.0, %v849
        %v851 = vpop.f32.mrf.mxu0
        %852 = vmatprep.mubr.f32.mxu0 0.0
        %853 = vmatmul.mubr.f32.gmra.mxu0 %v759
        %v854 = vpop.f32.mrf.mxu0
        %v855 = vadd.f32 0.0, %v854
        %v856 = vpop.f32.mrf.mxu0
        %857 = vmatprep.mubr.f32.mxu0 0.0
        %858 = vmatmul.mubr.f32.gmra.mxu0 %v762
        %v859 = vpop.f32.mrf.mxu0
        %v860 = vadd.f32 0.0, %v859
        %v861 = vpop.f32.mrf.mxu0
        %862 = vmatprep.mubr.f32.mxu0 0.0
        %863 = vmatmul.mubr.f32.gmra.mxu0 %v765
        %v864 = vpop.f32.mrf.mxu0
        %v865 = vadd.f32 0.0, %v864
        %v866 = vpop.f32.mrf.mxu0
        %867 = vmatprep.mubr.f32.mxu0 0.0
        %868 = vmatmul.mubr.f32.gmra.mxu0 %v768
        %v869 = vpop.f32.mrf.mxu0
        %v870 = vadd.f32 0.0, %v869
        %v871 = vpop.f32.mrf.mxu0
        %872 = vmatprep.mubr.f32.mxu0 0.0
        %873 = vmatmul.mubr.f32.gmra.mxu0 %v771
        %v874 = vpop.f32.mrf.mxu0
        %v875 = vadd.f32 0.0, %v874
        %v876 = vpop.f32.mrf.mxu0
        %877 = vmatprep.mubr.f32.mxu0 0.0
        %878 = vmatmul.mubr.f32.gmra.mxu0 %v774
        %v879 = vpop.f32.mrf.mxu0
        %v880 = vadd.f32 0.0, %v879
        %v881 = vpop.f32.mrf.mxu0
        %882 = vmatprep.mubr.f32.mxu0 0.0
        %883 = vmatmul.mubr.f32.gmra.mxu0 %v777
        %v884 = vpop.f32.mrf.mxu0
        %v885 = vadd.f32 0.0, %v884
        %v886 = vpop.f32.mrf.mxu0
        %887 = vdwg.mxu0
        %v889 = vsel %vm754, %v735, 0
        %v892 = vsel %vm754, %v736, 0
        %v895 = vsel %vm754, %v737, 0
        %v898 = vsel %vm754, %v738, 0
        %v901 = vsel %vm754, %v739, 0
        %v904 = vsel %vm754, %v740, 0
        %v907 = vsel %vm754, %v741, 0
        %v910 = vsel %vm754, %v742, 0
        %v913 = vsel %vm779, %v734, 0
        %915 = vmatprep.subr.mxu0 0.0
        %916 = vmatpush1.msra.mxu0 0.0
        %917 = vmatprep.subr.mxu0 0.0
        %918 = vmatpush1.msra.mxu0 0.0
        %919 = vmatprep.subr.mxu0 0.0
        %920 = vmatpush1.msra.mxu0 0.0
        %921 = vmatprep.subr.mxu0 0.0
        %922 = vmatpush1.msra.mxu0 0.0
        %923 = vmatprep.subr.mxu0 0.0
        %924 = vmatpush1.msra.mxu0 0.0
        %925 = vmatprep.subr.mxu0 0.0
        %926 = vmatpush1.msra.mxu0 0.0
        %927 = vmatprep.subr.mxu0 0.0
        %928 = vmatpush1.msra.mxu0 0.0
        %929 = vmatprep.subr.mxu0 0.0
        %930 = vmatpush1.msra.mxu0 0.0
        %931 = vmatprep.subr.mxu0 0.0
        %932 = vmatpush1.msra.mxu0 0.0
        %933 = vmatprep.subr.mxu0 0.0
        %934 = vmatpush1.msra.mxu0 0.0
        %935 = vmatprep.subr.mxu0 0.0
        %936 = vmatpush1.msra.mxu0 0.0
        %937 = vmatprep.subr.mxu0 0.0
        %938 = vmatpush1.msra.mxu0 0.0
        %939 = vmatprep.subr.mxu0 0.0
        %940 = vmatpush1.msra.mxu0 0.0
        %941 = vmatprep.subr.mxu0 0.0
        %942 = vmatpush1.msra.mxu0 0.0
        %943 = vmatprep.subr.mxu0 0.0
        %944 = vmatpush1.msra.mxu0 0.0
        %945 = vmatprep.subr.mxu0 0.0
        %946 = vmatpush1.msra.mxu0 %v913
        %947 = vmatprep.subr.mxu0 0.0
        %948 = vmatpush2.msra.mxu0 0.0
        %949 = vmatprep.subr.mxu0 0.0
        %950 = vmatpush2.msra.mxu0 0.0
        %951 = vmatprep.subr.mxu0 0.0
        %952 = vmatpush2.msra.mxu0 0.0
        %953 = vmatprep.subr.mxu0 0.0
        %954 = vmatpush2.msra.mxu0 0.0
        %955 = vmatprep.subr.mxu0 0.0
        %956 = vmatpush2.msra.mxu0 0.0
        %957 = vmatprep.subr.mxu0 0.0
        %958 = vmatpush2.msra.mxu0 0.0
        %959 = vmatprep.subr.mxu0 0.0
        %960 = vmatpush2.msra.mxu0 0.0
        %961 = vmatprep.subr.mxu0 0.0
        %962 = vmatpush2.msra.mxu0 0.0
        %963 = vmatprep.subr.mxu0 0.0
        %964 = vmatpush2.msra.mxu0 0.0
        %965 = vmatprep.subr.mxu0 0.0
        %966 = vmatpush2.msra.mxu0 0.0
        %967 = vmatprep.subr.mxu0 0.0
        %968 = vmatpush2.msra.mxu0 0.0
        %969 = vmatprep.subr.mxu0 0.0
        %970 = vmatpush2.msra.mxu0 0.0
        %971 = vmatprep.subr.mxu0 0.0
        %972 = vmatpush2.msra.mxu0 0.0
        %973 = vmatprep.subr.mxu0 0.0
        %974 = vmatpush2.msra.mxu0 0.0
        %975 = vmatprep.subr.mxu0 0.0
        %976 = vmatpush2.msra.mxu0 0.0
        %977 = vmatprep.subr.mxu0 0.0
        %978 = vmatpush2.msra.mxu0 0.0
        %979 = vmatprep.mubr.f32.mxu0 0.0
        %980 = vmatmul.mubr.f32.gmra.mxu0 %v889
        %v981 = vpop.f32.mrf.mxu0
        %v982 = vadd.f32 %v850, %v981
        %v983 = vpop.f32.mrf.mxu0
        %984 = vmatprep.mubr.f32.mxu0 0.0
        %985 = vmatmul.mubr.f32.gmra.mxu0 %v892
        %v986 = vpop.f32.mrf.mxu0
        %v987 = vadd.f32 %v855, %v986
        %v988 = vpop.f32.mrf.mxu0
        %989 = vmatprep.mubr.f32.mxu0 0.0
        %990 = vmatmul.mubr.f32.gmra.mxu0 %v895
        %v991 = vpop.f32.mrf.mxu0
        %v992 = vadd.f32 %v860, %v991
        %v993 = vpop.f32.mrf.mxu0
        %994 = vmatprep.mubr.f32.mxu0 0.0
        %995 = vmatmul.mubr.f32.gmra.mxu0 %v898
        %v996 = vpop.f32.mrf.mxu0
        %v997 = vadd.f32 %v865, %v996
        %v998 = vpop.f32.mrf.mxu0
        %999 = vmatprep.mubr.f32.mxu0 0.0
        %1000 = vmatmul.mubr.f32.gmra.mxu0 %v901
        %v1001 = vpop.f32.mrf.mxu0
        %v1002 = vadd.f32 %v870, %v1001
        %v1003 = vpop.f32.mrf.mxu0
        %1004 = vmatprep.mubr.f32.mxu0 0.0
        %1005 = vmatmul.mubr.f32.gmra.mxu0 %v904
        %v1006 = vpop.f32.mrf.mxu0
        %v1007 = vadd.f32 %v875, %v1006
        %v1008 = vpop.f32.mrf.mxu0
        %1009 = vmatprep.mubr.f32.mxu0 0.0
        %1010 = vmatmul.mubr.f32.gmra.mxu0 %v907
        %v1011 = vpop.f32.mrf.mxu0
        %v1012 = vadd.f32 %v880, %v1011
        %v1013 = vpop.f32.mrf.mxu0
        %1014 = vmatprep.mubr.f32.mxu0 0.0
        %1015 = vmatmul.mubr.f32.gmra.mxu0 %v910
        %v1016 = vpop.f32.mrf.mxu0
        %v1017 = vadd.f32 %v885, %v1016
        %v1018 = vpop.f32.mrf.mxu0
        %1019 = vdwg.mxu0
        %s1020 = scalar_lea.vmem %s729, 8
        %v1021 = vld [vmem:[%s1020] sm:$0xf]
        %v1022 = vld [vmem:[%s677 + $0x1] sm:$0xff]
        %v1023 = vld [vmem:[%s677 + $0x11] sm:$0xff]
        %v1024 = vld [vmem:[%s677 + $0x21] sm:$0xff]
        %v1025 = vld [vmem:[%s677 + $0x31] sm:$0xff]
        %v1026 = vld [vmem:[%s677 + $0x41] sm:$0xff]
        %v1027 = vld [vmem:[%s677 + $0x51] sm:$0xff]
        %v1028 = vld [vmem:[%s677 + $0x61] sm:$0xff]
        %v1029 = vld [vmem:[%s677 + $0x71] sm:$0xff]
        %v1031 = vsel %vm754, %v1022, 0
        %v1034 = vsel %vm754, %v1023, 0
        %v1037 = vsel %vm754, %v1024, 0
        %v1040 = vsel %vm754, %v1025, 0
        %v1043 = vsel %vm754, %v1026, 0
        %v1046 = vsel %vm754, %v1027, 0
        %v1049 = vsel %vm754, %v1028, 0
        %v1052 = vsel %vm754, %v1029, 0
        %v1055 = vsel %vm779, %v1021, 0
        %1057 = vmatprep.subr.mxu0 0.0
        %1058 = vmatpush1.msra.mxu0 0.0
        %1059 = vmatprep.subr.mxu0 0.0
        %1060 = vmatpush1.msra.mxu0 0.0
        %1061 = vmatprep.subr.mxu0 0.0
        %1062 = vmatpush1.msra.mxu0 0.0
        %1063 = vmatprep.subr.mxu0 0.0
        %1064 = vmatpush1.msra.mxu0 0.0
        %1065 = vmatprep.subr.mxu0 0.0
        %1066 = vmatpush1.msra.mxu0 0.0
        %1067 = vmatprep.subr.mxu0 0.0
        %1068 = vmatpush1.msra.mxu0 0.0
        %1069 = vmatprep.subr.mxu0 0.0
        %1070 = vmatpush1.msra.mxu0 0.0
        %1071 = vmatprep.subr.mxu0 0.0
        %1072 = vmatpush1.msra.mxu0 0.0
        %1073 = vmatprep.subr.mxu0 0.0
        %1074 = vmatpush1.msra.mxu0 0.0
        %1075 = vmatprep.subr.mxu0 0.0
        %1076 = vmatpush1.msra.mxu0 0.0
        %1077 = vmatprep.subr.mxu0 0.0
        %1078 = vmatpush1.msra.mxu0 0.0
        %1079 = vmatprep.subr.mxu0 0.0
        %1080 = vmatpush1.msra.mxu0 0.0
        %1081 = vmatprep.subr.mxu0 0.0
        %1082 = vmatpush1.msra.mxu0 0.0
        %1083 = vmatprep.subr.mxu0 0.0
        %1084 = vmatpush1.msra.mxu0 0.0
        %1085 = vmatprep.subr.mxu0 0.0
        %1086 = vmatpush1.msra.mxu0 0.0
        %1087 = vmatprep.subr.mxu0 0.0
        %1088 = vmatpush1.msra.mxu0 %v1055
        %1089 = vmatprep.subr.mxu0 0.0
        %1090 = vmatpush2.msra.mxu0 0.0
        %1091 = vmatprep.subr.mxu0 0.0
        %1092 = vmatpush2.msra.mxu0 0.0
        %1093 = vmatprep.subr.mxu0 0.0
        %1094 = vmatpush2.msra.mxu0 0.0
        %1095 = vmatprep.subr.mxu0 0.0
        %1096 = vmatpush2.msra.mxu0 0.0
        %1097 = vmatprep.subr.mxu0 0.0
        %1098 = vmatpush2.msra.mxu0 0.0
        %1099 = vmatprep.subr.mxu0 0.0
        %1100 = vmatpush2.msra.mxu0 0.0
        %1101 = vmatprep.subr.mxu0 0.0
        %1102 = vmatpush2.msra.mxu0 0.0
        %1103 = vmatprep.subr.mxu0 0.0
        %1104 = vmatpush2.msra.mxu0 0.0
        %1105 = vmatprep.subr.mxu0 0.0
        %1106 = vmatpush2.msra.mxu0 0.0
        %1107 = vmatprep.subr.mxu0 0.0
        %1108 = vmatpush2.msra.mxu0 0.0
        %1109 = vmatprep.subr.mxu0 0.0
        %1110 = vmatpush2.msra.mxu0 0.0
        %1111 = vmatprep.subr.mxu0 0.0
        %1112 = vmatpush2.msra.mxu0 0.0
        %1113 = vmatprep.subr.mxu0 0.0
        %1114 = vmatpush2.msra.mxu0 0.0
        %1115 = vmatprep.subr.mxu0 0.0
        %1116 = vmatpush2.msra.mxu0 0.0
        %1117 = vmatprep.subr.mxu0 0.0
        %1118 = vmatpush2.msra.mxu0 0.0
        %1119 = vmatprep.subr.mxu0 0.0
        %1120 = vmatpush2.msra.mxu0 0.0
        %1121 = vmatprep.mubr.f32.mxu0 0.0
        %1122 = vmatmul.mubr.f32.gmra.mxu0 %v1031
        %v1123 = vpop.f32.mrf.mxu0
        %v1124 = vadd.f32 0.0, %v1123
        %v1125 = vpop.f32.mrf.mxu0
        %1126 = vmatprep.mubr.f32.mxu0 0.0
        %1127 = vmatmul.mubr.f32.gmra.mxu0 %v1034
        %v1128 = vpop.f32.mrf.mxu0
        %v1129 = vadd.f32 0.0, %v1128
        %v1130 = vpop.f32.mrf.mxu0
        %1131 = vmatprep.mubr.f32.mxu0 0.0
        %1132 = vmatmul.mubr.f32.gmra.mxu0 %v1037
        %v1133 = vpop.f32.mrf.mxu0
        %v1134 = vadd.f32 0.0, %v1133
        %v1135 = vpop.f32.mrf.mxu0
        %1136 = vmatprep.mubr.f32.mxu0 0.0
        %1137 = vmatmul.mubr.f32.gmra.mxu0 %v1040
        %v1138 = vpop.f32.mrf.mxu0
        %v1139 = vadd.f32 0.0, %v1138
        %v1140 = vpop.f32.mrf.mxu0
        %1141 = vmatprep.mubr.f32.mxu0 0.0
        %1142 = vmatmul.mubr.f32.gmra.mxu0 %v1043
        %v1143 = vpop.f32.mrf.mxu0
        %v1144 = vadd.f32 0.0, %v1143
        %v1145 = vpop.f32.mrf.mxu0
        %1146 = vmatprep.mubr.f32.mxu0 0.0
        %1147 = vmatmul.mubr.f32.gmra.mxu0 %v1046
        %v1148 = vpop.f32.mrf.mxu0
        %v1149 = vadd.f32 0.0, %v1148
        %v1150 = vpop.f32.mrf.mxu0
        %1151 = vmatprep.mubr.f32.mxu0 0.0
        %1152 = vmatmul.mubr.f32.gmra.mxu0 %v1049
        %v1153 = vpop.f32.mrf.mxu0
        %v1154 = vadd.f32 0.0, %v1153
        %v1155 = vpop.f32.mrf.mxu0
        %1156 = vmatprep.mubr.f32.mxu0 0.0
        %1157 = vmatmul.mubr.f32.gmra.mxu0 %v1052
        %v1158 = vpop.f32.mrf.mxu0
        %v1159 = vadd.f32 0.0, %v1158
        %v1160 = vpop.f32.mrf.mxu0
        %1161 = vdwg.mxu0
        %v1162 = vadd.f32 %v982, %v1124
        %v1163 = vadd.f32 %v987, %v1129
        %v1164 = vadd.f32 %v992, %v1134
        %v1165 = vadd.f32 %v997, %v1139
        %v1166 = vadd.f32 %v1002, %v1144
        %v1167 = vadd.f32 %v1007, %v1149
        %v1168 = vadd.f32 %v1012, %v1154
        %v1169 = vadd.f32 %v1017, %v1159
        %s1170 = scalar_lea.vmem %s729, 12
        %v1171 = vld [vmem:[%s1170] sm:$0xf]
        %s1172 = scalar_lea.vmem %s677, 256 [#allocation2]
        %v1173 = vld [vmem:[%s1172] sm:$0xff]
        %v1174 = vld [vmem:[%s1172 + $0x10] sm:$0xff]
        %v1175 = vld [vmem:[%s1172 + $0x20] sm:$0xff]
        %v1176 = vld [vmem:[%s1172 + $0x30] sm:$0xff]
        %v1177 = vld [vmem:[%s1172 + $0x40] sm:$0xff]
        %v1178 = vld [vmem:[%s1172 + $0x50] sm:$0xff]
        %v1179 = vld [vmem:[%s1172 + $0x60] sm:$0xff]
        %v1180 = vld [vmem:[%s1172 + $0x70] sm:$0xff]
        %v1182 = vsel %vm754, %v1173, 0
        %v1185 = vsel %vm754, %v1174, 0
        %v1188 = vsel %vm754, %v1175, 0
        %v1191 = vsel %vm754, %v1176, 0
        %v1194 = vsel %vm754, %v1177, 0
        %v1197 = vsel %vm754, %v1178, 0
        %v1200 = vsel %vm754, %v1179, 0
        %v1203 = vsel %vm754, %v1180, 0
        %v1206 = vsel %vm779, %v1171, 0
        %1208 = vmatprep.subr.mxu0 0.0
        %1209 = vmatpush1.msra.mxu0 0.0
        %1210 = vmatprep.subr.mxu0 0.0
        %1211 = vmatpush1.msra.mxu0 0.0
        %1212 = vmatprep.subr.mxu0 0.0
        %1213 = vmatpush1.msra.mxu0 0.0
        %1214 = vmatprep.subr.mxu0 0.0
        %1215 = vmatpush1.msra.mxu0 0.0
        %1216 = vmatprep.subr.mxu0 0.0
        %1217 = vmatpush1.msra.mxu0 0.0
        %1218 = vmatprep.subr.mxu0 0.0
        %1219 = vmatpush1.msra.mxu0 0.0
        %1220 = vmatprep.subr.mxu0 0.0
        %1221 = vmatpush1.msra.mxu0 0.0
        %1222 = vmatprep.subr.mxu0 0.0
        %1223 = vmatpush1.msra.mxu0 0.0
        %1224 = vmatprep.subr.mxu0 0.0
        %1225 = vmatpush1.msra.mxu0 0.0
        %1226 = vmatprep.subr.mxu0 0.0
        %1227 = vmatpush1.msra.mxu0 0.0
        %1228 = vmatprep.subr.mxu0 0.0
        %1229 = vmatpush1.msra.mxu0 0.0
        %1230 = vmatprep.subr.mxu0 0.0
        %1231 = vmatpush1.msra.mxu0 0.0
        %1232 = vmatprep.subr.mxu0 0.0
        %1233 = vmatpush1.msra.mxu0 0.0
        %1234 = vmatprep.subr.mxu0 0.0
        %1235 = vmatpush1.msra.mxu0 0.0
        %1236 = vmatprep.subr.mxu0 0.0
        %1237 = vmatpush1.msra.mxu0 0.0
        %1238 = vmatprep.subr.mxu0 0.0
        %1239 = vmatpush1.msra.mxu0 %v1206
        %1240 = vmatprep.subr.mxu0 0.0
        %1241 = vmatpush2.msra.mxu0 0.0
        %1242 = vmatprep.subr.mxu0 0.0
        %1243 = vmatpush2.msra.mxu0 0.0
        %1244 = vmatprep.subr.mxu0 0.0
        %1245 = vmatpush2.msra.mxu0 0.0
        %1246 = vmatprep.subr.mxu0 0.0
        %1247 = vmatpush2.msra.mxu0 0.0
        %1248 = vmatprep.subr.mxu0 0.0
        %1249 = vmatpush2.msra.mxu0 0.0
        %1250 = vmatprep.subr.mxu0 0.0
        %1251 = vmatpush2.msra.mxu0 0.0
        %1252 = vmatprep.subr.mxu0 0.0
        %1253 = vmatpush2.msra.mxu0 0.0
        %1254 = vmatprep.subr.mxu0 0.0
        %1255 = vmatpush2.msra.mxu0 0.0
        %1256 = vmatprep.subr.mxu0 0.0
        %1257 = vmatpush2.msra.mxu0 0.0
        %1258 = vmatprep.subr.mxu0 0.0
        %1259 = vmatpush2.msra.mxu0 0.0
        %1260 = vmatprep.subr.mxu0 0.0
        %1261 = vmatpush2.msra.mxu0 0.0
        %1262 = vmatprep.subr.mxu0 0.0
        %1263 = vmatpush2.msra.mxu0 0.0
        %1264 = vmatprep.subr.mxu0 0.0
        %1265 = vmatpush2.msra.mxu0 0.0
        %1266 = vmatprep.subr.mxu0 0.0
        %1267 = vmatpush2.msra.mxu0 0.0
        %1268 = vmatprep.subr.mxu0 0.0
        %1269 = vmatpush2.msra.mxu0 0.0
        %1270 = vmatprep.subr.mxu0 0.0
        %1271 = vmatpush2.msra.mxu0 0.0
        %1272 = vmatprep.mubr.f32.mxu0 0.0
        %1273 = vmatmul.mubr.f32.gmra.mxu0 %v1182
        %v1274 = vpop.f32.mrf.mxu0
        %v1275 = vadd.f32 0.0, %v1274
        %v1276 = vpop.f32.mrf.mxu0
        %1277 = vmatprep.mubr.f32.mxu0 0.0
        %1278 = vmatmul.mubr.f32.gmra.mxu0 %v1185
        %v1279 = vpop.f32.mrf.mxu0
        %v1280 = vadd.f32 0.0, %v1279
        %v1281 = vpop.f32.mrf.mxu0
        %1282 = vmatprep.mubr.f32.mxu0 0.0
        %1283 = vmatmul.mubr.f32.gmra.mxu0 %v1188
        %v1284 = vpop.f32.mrf.mxu0
        %v1285 = vadd.f32 0.0, %v1284
        %v1286 = vpop.f32.mrf.mxu0
        %1287 = vmatprep.mubr.f32.mxu0 0.0
        %1288 = vmatmul.mubr.f32.gmra.mxu0 %v1191
        %v1289 = vpop.f32.mrf.mxu0
        %v1290 = vadd.f32 0.0, %v1289
        %v1291 = vpop.f32.mrf.mxu0
        %1292 = vmatprep.mubr.f32.mxu0 0.0
        %1293 = vmatmul.mubr.f32.gmra.mxu0 %v1194
        %v1294 = vpop.f32.mrf.mxu0
        %v1295 = vadd.f32 0.0, %v1294
        %v1296 = vpop.f32.mrf.mxu0
        %1297 = vmatprep.mubr.f32.mxu0 0.0
        %1298 = vmatmul.mubr.f32.gmra.mxu0 %v1197
        %v1299 = vpop.f32.mrf.mxu0
        %v1300 = vadd.f32 0.0, %v1299
        %v1301 = vpop.f32.mrf.mxu0
        %1302 = vmatprep.mubr.f32.mxu0 0.0
        %1303 = vmatmul.mubr.f32.gmra.mxu0 %v1200
        %v1304 = vpop.f32.mrf.mxu0
        %v1305 = vadd.f32 0.0, %v1304
        %v1306 = vpop.f32.mrf.mxu0
        %1307 = vmatprep.mubr.f32.mxu0 0.0
        %1308 = vmatmul.mubr.f32.gmra.mxu0 %v1203
        %v1309 = vpop.f32.mrf.mxu0
        %v1310 = vadd.f32 0.0, %v1309
        %v1311 = vpop.f32.mrf.mxu0
        %1312 = vdwg.mxu0
        %v1313 = vadd.f32 %v1162, %v1275
        %v1314 = vadd.f32 %v1163, %v1280
        %v1315 = vadd.f32 %v1164, %v1285
        %v1316 = vadd.f32 %v1165, %v1290
        %v1317 = vadd.f32 %v1166, %v1295
        %v1318 = vadd.f32 %v1167, %v1300
        %v1319 = vadd.f32 %v1168, %v1305
        %v1320 = vadd.f32 %v1169, %v1310
        %s1321 = scalar_lea.vmem %s729, 16
        %v1322 = vld [vmem:[%s1321] sm:$0xf]
        %s1323 = scalar_lea.vmem %s677, 384 [#allocation2]
        %v1324 = vld [vmem:[%s1323] sm:$0xff]
        %v1325 = vld [vmem:[%s1323 + $0x10] sm:$0xff]
        %v1326 = vld [vmem:[%s1323 + $0x20] sm:$0xff]
        %v1327 = vld [vmem:[%s1323 + $0x30] sm:$0xff]
        %v1328 = vld [vmem:[%s1323 + $0x40] sm:$0xff]
        %v1329 = vld [vmem:[%s1323 + $0x50] sm:$0xff]
        %v1330 = vld [vmem:[%s1323 + $0x60] sm:$0xff]
        %v1331 = vld [vmem:[%s1323 + $0x70] sm:$0xff]
        %v1333 = vsel %vm754, %v1324, 0
        %v1336 = vsel %vm754, %v1325, 0
        %v1339 = vsel %vm754, %v1326, 0
        %v1342 = vsel %vm754, %v1327, 0
        %v1345 = vsel %vm754, %v1328, 0
        %v1348 = vsel %vm754, %v1329, 0
        %v1351 = vsel %vm754, %v1330, 0
        %v1354 = vsel %vm754, %v1331, 0
        %v1357 = vsel %vm779, %v1322, 0
        %1359 = vmatprep.subr.mxu0 0.0
        %1360 = vmatpush1.msra.mxu0 0.0
        %1361 = vmatprep.subr.mxu0 0.0
        %1362 = vmatpush1.msra.mxu0 0.0
        %1363 = vmatprep.subr.mxu0 0.0
        %1364 = vmatpush1.msra.mxu0 0.0
        %1365 = vmatprep.subr.mxu0 0.0
        %1366 = vmatpush1.msra.mxu0 0.0
        %1367 = vmatprep.subr.mxu0 0.0
        %1368 = vmatpush1.msra.mxu0 0.0
        %1369 = vmatprep.subr.mxu0 0.0
        %1370 = vmatpush1.msra.mxu0 0.0
        %1371 = vmatprep.subr.mxu0 0.0
        %1372 = vmatpush1.msra.mxu0 0.0
        %1373 = vmatprep.subr.mxu0 0.0
        %1374 = vmatpush1.msra.mxu0 0.0
        %1375 = vmatprep.subr.mxu0 0.0
        %1376 = vmatpush1.msra.mxu0 0.0
        %1377 = vmatprep.subr.mxu0 0.0
        %1378 = vmatpush1.msra.mxu0 0.0
        %1379 = vmatprep.subr.mxu0 0.0
        %1380 = vmatpush1.msra.mxu0 0.0
        %1381 = vmatprep.subr.mxu0 0.0
        %1382 = vmatpush1.msra.mxu0 0.0
        %1383 = vmatprep.subr.mxu0 0.0
        %1384 = vmatpush1.msra.mxu0 0.0
        %1385 = vmatprep.subr.mxu0 0.0
        %1386 = vmatpush1.msra.mxu0 0.0
        %1387 = vmatprep.subr.mxu0 0.0
        %1388 = vmatpush1.msra.mxu0 0.0
        %1389 = vmatprep.subr.mxu0 0.0
        %1390 = vmatpush1.msra.mxu0 %v1357
        %1391 = vmatprep.subr.mxu0 0.0
        %1392 = vmatpush2.msra.mxu0 0.0
        %1393 = vmatprep.subr.mxu0 0.0
        %1394 = vmatpush2.msra.mxu0 0.0
        %1395 = vmatprep.subr.mxu0 0.0
        %1396 = vmatpush2.msra.mxu0 0.0
        %1397 = vmatprep.subr.mxu0 0.0
        %1398 = vmatpush2.msra.mxu0 0.0
        %1399 = vmatprep.subr.mxu0 0.0
        %1400 = vmatpush2.msra.mxu0 0.0
        %1401 = vmatprep.subr.mxu0 0.0
        %1402 = vmatpush2.msra.mxu0 0.0
        %1403 = vmatprep.subr.mxu0 0.0
        %1404 = vmatpush2.msra.mxu0 0.0
        %1405 = vmatprep.subr.mxu0 0.0
        %1406 = vmatpush2.msra.mxu0 0.0
        %1407 = vmatprep.subr.mxu0 0.0
        %1408 = vmatpush2.msra.mxu0 0.0
        %1409 = vmatprep.subr.mxu0 0.0
        %1410 = vmatpush2.msra.mxu0 0.0
        %1411 = vmatprep.subr.mxu0 0.0
        %1412 = vmatpush2.msra.mxu0 0.0
        %1413 = vmatprep.subr.mxu0 0.0
        %1414 = vmatpush2.msra.mxu0 0.0
        %1415 = vmatprep.subr.mxu0 0.0
        %1416 = vmatpush2.msra.mxu0 0.0
        %1417 = vmatprep.subr.mxu0 0.0
        %1418 = vmatpush2.msra.mxu0 0.0
        %1419 = vmatprep.subr.mxu0 0.0
        %1420 = vmatpush2.msra.mxu0 0.0
        %1421 = vmatprep.subr.mxu0 0.0
        %1422 = vmatpush2.msra.mxu0 0.0
        %1423 = vmatprep.mubr.f32.mxu0 0.0
        %1424 = vmatmul.mubr.f32.gmra.mxu0 %v1333
        %v1425 = vpop.f32.mrf.mxu0
        %v1426 = vadd.f32 0.0, %v1425
        %v1427 = vpop.f32.mrf.mxu0
        %1428 = vmatprep.mubr.f32.mxu0 0.0
        %1429 = vmatmul.mubr.f32.gmra.mxu0 %v1336
        %v1430 = vpop.f32.mrf.mxu0
        %v1431 = vadd.f32 0.0, %v1430
        %v1432 = vpop.f32.mrf.mxu0
        %1433 = vmatprep.mubr.f32.mxu0 0.0
        %1434 = vmatmul.mubr.f32.gmra.mxu0 %v1339
        %v1435 = vpop.f32.mrf.mxu0
        %v1436 = vadd.f32 0.0, %v1435
        %v1437 = vpop.f32.mrf.mxu0
        %1438 = vmatprep.mubr.f32.mxu0 0.0
        %1439 = vmatmul.mubr.f32.gmra.mxu0 %v1342
        %v1440 = vpop.f32.mrf.mxu0
        %v1441 = vadd.f32 0.0, %v1440
        %v1442 = vpop.f32.mrf.mxu0
        %1443 = vmatprep.mubr.f32.mxu0 0.0
        %1444 = vmatmul.mubr.f32.gmra.mxu0 %v1345
        %v1445 = vpop.f32.mrf.mxu0
        %v1446 = vadd.f32 0.0, %v1445
        %v1447 = vpop.f32.mrf.mxu0
        %1448 = vmatprep.mubr.f32.mxu0 0.0
        %1449 = vmatmul.mubr.f32.gmra.mxu0 %v1348
        %v1450 = vpop.f32.mrf.mxu0
        %v1451 = vadd.f32 0.0, %v1450
        %v1452 = vpop.f32.mrf.mxu0
        %1453 = vmatprep.mubr.f32.mxu0 0.0
        %1454 = vmatmul.mubr.f32.gmra.mxu0 %v1351
        %v1455 = vpop.f32.mrf.mxu0
        %v1456 = vadd.f32 0.0, %v1455
        %v1457 = vpop.f32.mrf.mxu0
        %1458 = vmatprep.mubr.f32.mxu0 0.0
        %1459 = vmatmul.mubr.f32.gmra.mxu0 %v1354
        %v1460 = vpop.f32.mrf.mxu0
        %v1461 = vadd.f32 0.0, %v1460
        %v1462 = vpop.f32.mrf.mxu0
        %1463 = vdwg.mxu0
        %v1464 = vadd.f32 %v1313, %v1426
        %v1465 = vadd.f32 %v1314, %v1431
        %v1466 = vadd.f32 %v1315, %v1436
        %v1467 = vadd.f32 %v1316, %v1441
        %v1468 = vadd.f32 %v1317, %v1446
        %v1469 = vadd.f32 %v1318, %v1451
        %v1470 = vadd.f32 %v1319, %v1456
        %v1471 = vadd.f32 %v1320, %v1461
        %s1472 = scalar_lea.vmem %s729, 20
        %v1473 = vld [vmem:[%s1472] sm:$0xf]
        %v1474 = vld [vmem:[%s1172 + $0x1] sm:$0xff]
        %v1475 = vld [vmem:[%s1172 + $0x11] sm:$0xff]
        %v1476 = vld [vmem:[%s1172 + $0x21] sm:$0xff]
        %v1477 = vld [vmem:[%s1172 + $0x31] sm:$0xff]
        %v1478 = vld [vmem:[%s1172 + $0x41] sm:$0xff]
        %v1479 = vld [vmem:[%s1172 + $0x51] sm:$0xff]
        %v1480 = vld [vmem:[%s1172 + $0x61] sm:$0xff]
        %v1481 = vld [vmem:[%s1172 + $0x71] sm:$0xff]
        %v1483 = vsel %vm754, %v1474, 0
        %v1486 = vsel %vm754, %v1475, 0
        %v1489 = vsel %vm754, %v1476, 0
        %v1492 = vsel %vm754, %v1477, 0
        %v1495 = vsel %vm754, %v1478, 0
        %v1498 = vsel %vm754, %v1479, 0
        %v1501 = vsel %vm754, %v1480, 0
        %v1504 = vsel %vm754, %v1481, 0
        %v1507 = vsel %vm779, %v1473, 0
        %1509 = vmatprep.subr.mxu0 0.0
        %1510 = vmatpush1.msra.mxu0 0.0
        %1511 = vmatprep.subr.mxu0 0.0
        %1512 = vmatpush1.msra.mxu0 0.0
        %1513 = vmatprep.subr.mxu0 0.0
        %1514 = vmatpush1.msra.mxu0 0.0
        %1515 = vmatprep.subr.mxu0 0.0
        %1516 = vmatpush1.msra.mxu0 0.0
        %1517 = vmatprep.subr.mxu0 0.0
        %1518 = vmatpush1.msra.mxu0 0.0
        %1519 = vmatprep.subr.mxu0 0.0
        %1520 = vmatpush1.msra.mxu0 0.0
        %1521 = vmatprep.subr.mxu0 0.0
        %1522 = vmatpush1.msra.mxu0 0.0
        %1523 = vmatprep.subr.mxu0 0.0
        %1524 = vmatpush1.msra.mxu0 0.0
        %1525 = vmatprep.subr.mxu0 0.0
        %1526 = vmatpush1.msra.mxu0 0.0
        %1527 = vmatprep.subr.mxu0 0.0
        %1528 = vmatpush1.msra.mxu0 0.0
        %1529 = vmatprep.subr.mxu0 0.0
        %1530 = vmatpush1.msra.mxu0 0.0
        %1531 = vmatprep.subr.mxu0 0.0
        %1532 = vmatpush1.msra.mxu0 0.0
        %1533 = vmatprep.subr.mxu0 0.0
        %1534 = vmatpush1.msra.mxu0 0.0
        %1535 = vmatprep.subr.mxu0 0.0
        %1536 = vmatpush1.msra.mxu0 0.0
        %1537 = vmatprep.subr.mxu0 0.0
        %1538 = vmatpush1.msra.mxu0 0.0
        %1539 = vmatprep.subr.mxu0 0.0
        %1540 = vmatpush1.msra.mxu0 %v1507
        %1541 = vmatprep.subr.mxu0 0.0
        %1542 = vmatpush2.msra.mxu0 0.0
        %1543 = vmatprep.subr.mxu0 0.0
        %1544 = vmatpush2.msra.mxu0 0.0
        %1545 = vmatprep.subr.mxu0 0.0
        %1546 = vmatpush2.msra.mxu0 0.0
        %1547 = vmatprep.subr.mxu0 0.0
        %1548 = vmatpush2.msra.mxu0 0.0
        %1549 = vmatprep.subr.mxu0 0.0
        %1550 = vmatpush2.msra.mxu0 0.0
        %1551 = vmatprep.subr.mxu0 0.0
        %1552 = vmatpush2.msra.mxu0 0.0
        %1553 = vmatprep.subr.mxu0 0.0
        %1554 = vmatpush2.msra.mxu0 0.0
        %1555 = vmatprep.subr.mxu0 0.0
        %1556 = vmatpush2.msra.mxu0 0.0
        %1557 = vmatprep.subr.mxu0 0.0
        %1558 = vmatpush2.msra.mxu0 0.0
        %1559 = vmatprep.subr.mxu0 0.0
        %1560 = vmatpush2.msra.mxu0 0.0
        %1561 = vmatprep.subr.mxu0 0.0
        %1562 = vmatpush2.msra.mxu0 0.0
        %1563 = vmatprep.subr.mxu0 0.0
        %1564 = vmatpush2.msra.mxu0 0.0
        %1565 = vmatprep.subr.mxu0 0.0
        %1566 = vmatpush2.msra.mxu0 0.0
        %1567 = vmatprep.subr.mxu0 0.0
        %1568 = vmatpush2.msra.mxu0 0.0
        %1569 = vmatprep.subr.mxu0 0.0
        %1570 = vmatpush2.msra.mxu0 0.0
        %1571 = vmatprep.subr.mxu0 0.0
        %1572 = vmatpush2.msra.mxu0 0.0
        %1573 = vmatprep.mubr.f32.mxu0 0.0
        %1574 = vmatmul.mubr.f32.gmra.mxu0 %v1483
        %v1575 = vpop.f32.mrf.mxu0
        %v1576 = vadd.f32 0.0, %v1575
        %v1577 = vpop.f32.mrf.mxu0
        %1578 = vmatprep.mubr.f32.mxu0 0.0
        %1579 = vmatmul.mubr.f32.gmra.mxu0 %v1486
        %v1580 = vpop.f32.mrf.mxu0
        %v1581 = vadd.f32 0.0, %v1580
        %v1582 = vpop.f32.mrf.mxu0
        %1583 = vmatprep.mubr.f32.mxu0 0.0
        %1584 = vmatmul.mubr.f32.gmra.mxu0 %v1489
        %v1585 = vpop.f32.mrf.mxu0
        %v1586 = vadd.f32 0.0, %v1585
        %v1587 = vpop.f32.mrf.mxu0
        %1588 = vmatprep.mubr.f32.mxu0 0.0
        %1589 = vmatmul.mubr.f32.gmra.mxu0 %v1492
        %v1590 = vpop.f32.mrf.mxu0
        %v1591 = vadd.f32 0.0, %v1590
        %v1592 = vpop.f32.mrf.mxu0
        %1593 = vmatprep.mubr.f32.mxu0 0.0
        %1594 = vmatmul.mubr.f32.gmra.mxu0 %v1495
        %v1595 = vpop.f32.mrf.mxu0
        %v1596 = vadd.f32 0.0, %v1595
        %v1597 = vpop.f32.mrf.mxu0
        %1598 = vmatprep.mubr.f32.mxu0 0.0
        %1599 = vmatmul.mubr.f32.gmra.mxu0 %v1498
        %v1600 = vpop.f32.mrf.mxu0
        %v1601 = vadd.f32 0.0, %v1600
        %v1602 = vpop.f32.mrf.mxu0
        %1603 = vmatprep.mubr.f32.mxu0 0.0
        %1604 = vmatmul.mubr.f32.gmra.mxu0 %v1501
        %v1605 = vpop.f32.mrf.mxu0
        %v1606 = vadd.f32 0.0, %v1605
        %v1607 = vpop.f32.mrf.mxu0
        %1608 = vmatprep.mubr.f32.mxu0 0.0
        %1609 = vmatmul.mubr.f32.gmra.mxu0 %v1504
        %v1610 = vpop.f32.mrf.mxu0
        %v1611 = vadd.f32 0.0, %v1610
        %v1612 = vpop.f32.mrf.mxu0
        %1613 = vdwg.mxu0
        %v1614 = vadd.f32 %v1464, %v1576
        %v1615 = vadd.f32 %v1465, %v1581
        %v1616 = vadd.f32 %v1466, %v1586
        %v1617 = vadd.f32 %v1467, %v1591
        %v1618 = vadd.f32 %v1468, %v1596
        %v1619 = vadd.f32 %v1469, %v1601
        %v1620 = vadd.f32 %v1470, %v1606
        %v1621 = vadd.f32 %v1471, %v1611
        %s1622 = scalar_lea.vmem %s729, 24
        %v1623 = vld [vmem:[%s1622] sm:$0xf]
        %s1624 = scalar_lea.vmem %s677, 16 [#allocation2]
        %v1625 = vld [vmem:[%s1624] sm:$0xff]
        %v1626 = vld [vmem:[%s1624 + $0x10] sm:$0xff]
        %v1627 = vld [vmem:[%s1624 + $0x20] sm:$0xff]
        %v1628 = vld [vmem:[%s1624 + $0x30] sm:$0xff]
        %v1629 = vld [vmem:[%s1624 + $0x40] sm:$0xff]
        %v1630 = vld [vmem:[%s1624 + $0x50] sm:$0xff]
        %v1631 = vld [vmem:[%s1624 + $0x60] sm:$0xff]
        %v1632 = vld [vmem:[%s684] sm:$0xff]
        %s1633 = scalar_lea.vmem %s729, 28
        %v1634 = vld [vmem:[%s1633] sm:$0xf]
        %s1635 = scalar_lea.vmem %s677, 144 [#allocation2]
        %v1636 = vld [vmem:[%s1635] sm:$0xff]
        %v1637 = vld [vmem:[%s1635 + $0x10] sm:$0xff]
        %v1638 = vld [vmem:[%s1635 + $0x20] sm:$0xff]
        %v1639 = vld [vmem:[%s1635 + $0x30] sm:$0xff]
        %v1640 = vld [vmem:[%s1635 + $0x40] sm:$0xff]
        %v1641 = vld [vmem:[%s1635 + $0x50] sm:$0xff]
        %v1642 = vld [vmem:[%s1635 + $0x60] sm:$0xff]
        %v1644 = vsel %vm754, %v1636, 0
        %v1647 = vsel %vm754, %v1637, 0
        %v1650 = vsel %vm754, %v1638, 0
        %v1653 = vsel %vm754, %v1639, 0
        %v1656 = vsel %vm754, %v1640, 0
        %v1659 = vsel %vm754, %v1641, 0
        %v1662 = vsel %vm754, %v1642, 0
        %v1665 = vsel %vm779, %v1634, 0
        %1667 = vmatprep.subr.mxu0 0.0
        %1668 = vmatpush1.msra.mxu0 0.0
        %1669 = vmatprep.subr.mxu0 0.0
        %1670 = vmatpush1.msra.mxu0 0.0
        %1671 = vmatprep.subr.mxu0 0.0
        %1672 = vmatpush1.msra.mxu0 0.0
        %1673 = vmatprep.subr.mxu0 0.0
        %1674 = vmatpush1.msra.mxu0 0.0
        %1675 = vmatprep.subr.mxu0 0.0
        %1676 = vmatpush1.msra.mxu0 0.0
        %1677 = vmatprep.subr.mxu0 0.0
        %1678 = vmatpush1.msra.mxu0 0.0
        %1679 = vmatprep.subr.mxu0 0.0
        %1680 = vmatpush1.msra.mxu0 0.0
        %1681 = vmatprep.subr.mxu0 0.0
        %1682 = vmatpush1.msra.mxu0 0.0
        %1683 = vmatprep.subr.mxu0 0.0
        %1684 = vmatpush1.msra.mxu0 0.0
        %1685 = vmatprep.subr.mxu0 0.0
        %1686 = vmatpush1.msra.mxu0 0.0
        %1687 = vmatprep.subr.mxu0 0.0
        %1688 = vmatpush1.msra.mxu0 0.0
        %1689 = vmatprep.subr.mxu0 0.0
        %1690 = vmatpush1.msra.mxu0 0.0
        %1691 = vmatprep.subr.mxu0 0.0
        %1692 = vmatpush1.msra.mxu0 0.0
        %1693 = vmatprep.subr.mxu0 0.0
        %1694 = vmatpush1.msra.mxu0 0.0
        %1695 = vmatprep.subr.mxu0 0.0
        %1696 = vmatpush1.msra.mxu0 0.0
        %1697 = vmatprep.subr.mxu0 0.0
        %1698 = vmatpush1.msra.mxu0 %v1665
        %1699 = vmatprep.subr.mxu0 0.0
        %1700 = vmatpush2.msra.mxu0 0.0
        %1701 = vmatprep.subr.mxu0 0.0
        %1702 = vmatpush2.msra.mxu0 0.0
        %1703 = vmatprep.subr.mxu0 0.0
        %1704 = vmatpush2.msra.mxu0 0.0
        %1705 = vmatprep.subr.mxu0 0.0
        %1706 = vmatpush2.msra.mxu0 0.0
        %1707 = vmatprep.subr.mxu0 0.0
        %1708 = vmatpush2.msra.mxu0 0.0
        %1709 = vmatprep.subr.mxu0 0.0
        %1710 = vmatpush2.msra.mxu0 0.0
        %1711 = vmatprep.subr.mxu0 0.0
        %1712 = vmatpush2.msra.mxu0 0.0
        %1713 = vmatprep.subr.mxu0 0.0
        %1714 = vmatpush2.msra.mxu0 0.0
        %1715 = vmatprep.subr.mxu0 0.0
        %1716 = vmatpush2.msra.mxu0 0.0
        %1717 = vmatprep.subr.mxu0 0.0
        %1718 = vmatpush2.msra.mxu0 0.0
        %1719 = vmatprep.subr.mxu0 0.0
        %1720 = vmatpush2.msra.mxu0 0.0
        %1721 = vmatprep.subr.mxu0 0.0
        %1722 = vmatpush2.msra.mxu0 0.0
        %1723 = vmatprep.subr.mxu0 0.0
        %1724 = vmatpush2.msra.mxu0 0.0
        %1725 = vmatprep.subr.mxu0 0.0
        %1726 = vmatpush2.msra.mxu0 0.0
        %1727 = vmatprep.subr.mxu0 0.0
        %1728 = vmatpush2.msra.mxu0 0.0
        %1729 = vmatprep.subr.mxu0 0.0
        %1730 = vmatpush2.msra.mxu0 0.0
        %1731 = vmatprep.mubr.f32.mxu0 0.0
        %1732 = vmatmul.mubr.f32.gmra.mxu0 %v1644
        %v1733 = vpop.f32.mrf.mxu0
        %v1734 = vadd.f32 0.0, %v1733
        %v1735 = vpop.f32.mrf.mxu0
        %1736 = vmatprep.mubr.f32.mxu0 0.0
        %1737 = vmatmul.mubr.f32.gmra.mxu0 %v1647
        %v1738 = vpop.f32.mrf.mxu0
        %v1739 = vadd.f32 0.0, %v1738
        %v1740 = vpop.f32.mrf.mxu0
        %1741 = vmatprep.mubr.f32.mxu0 0.0
        %1742 = vmatmul.mubr.f32.gmra.mxu0 %v1650
        %v1743 = vpop.f32.mrf.mxu0
        %v1744 = vadd.f32 0.0, %v1743
        %v1745 = vpop.f32.mrf.mxu0
        %1746 = vmatprep.mubr.f32.mxu0 0.0
        %1747 = vmatmul.mubr.f32.gmra.mxu0 %v1653
        %v1748 = vpop.f32.mrf.mxu0
        %v1749 = vadd.f32 0.0, %v1748
        %v1750 = vpop.f32.mrf.mxu0
        %1751 = vmatprep.mubr.f32.mxu0 0.0
        %1752 = vmatmul.mubr.f32.gmra.mxu0 %v1656
        %v1753 = vpop.f32.mrf.mxu0
        %v1754 = vadd.f32 0.0, %v1753
        %v1755 = vpop.f32.mrf.mxu0
        %1756 = vmatprep.mubr.f32.mxu0 0.0
        %1757 = vmatmul.mubr.f32.gmra.mxu0 %v1659
        %v1758 = vpop.f32.mrf.mxu0
        %v1759 = vadd.f32 0.0, %v1758
        %v1760 = vpop.f32.mrf.mxu0
        %1761 = vmatprep.mubr.f32.mxu0 0.0
        %1762 = vmatmul.mubr.f32.gmra.mxu0 %v1662
        %v1763 = vpop.f32.mrf.mxu0
        %v1764 = vadd.f32 0.0, %v1763
        %v1765 = vpop.f32.mrf.mxu0
        %1766 = vdwg.mxu0
        %v1768 = vsel %vm754, %v1625, 0
        %v1771 = vsel %vm754, %v1626, 0
        %v1774 = vsel %vm754, %v1627, 0
        %v1777 = vsel %vm754, %v1628, 0
        %v1780 = vsel %vm754, %v1629, 0
        %v1783 = vsel %vm754, %v1630, 0
        %v1786 = vsel %vm754, %v1631, 0
        %v1789 = vsel %vm779, %v1623, 0
        %1791 = vmatprep.subr.mxu0 0.0
        %1792 = vmatpush1.msra.mxu0 0.0
        %1793 = vmatprep.subr.mxu0 0.0
        %1794 = vmatpush1.msra.mxu0 0.0
        %1795 = vmatprep.subr.mxu0 0.0
        %1796 = vmatpush1.msra.mxu0 0.0
        %1797 = vmatprep.subr.mxu0 0.0
        %1798 = vmatpush1.msra.mxu0 0.0
        %1799 = vmatprep.subr.mxu0 0.0
        %1800 = vmatpush1.msra.mxu0 0.0
        %1801 = vmatprep.subr.mxu0 0.0
        %1802 = vmatpush1.msra.mxu0 0.0
        %1803 = vmatprep.subr.mxu0 0.0
        %1804 = vmatpush1.msra.mxu0 0.0
        %1805 = vmatprep.subr.mxu0 0.0
        %1806 = vmatpush1.msra.mxu0 0.0
        %1807 = vmatprep.subr.mxu0 0.0
        %1808 = vmatpush1.msra.mxu0 0.0
        %1809 = vmatprep.subr.mxu0 0.0
        %1810 = vmatpush1.msra.mxu0 0.0
        %1811 = vmatprep.subr.mxu0 0.0
        %1812 = vmatpush1.msra.mxu0 0.0
        %1813 = vmatprep.subr.mxu0 0.0
        %1814 = vmatpush1.msra.mxu0 0.0
        %1815 = vmatprep.subr.mxu0 0.0
        %1816 = vmatpush1.msra.mxu0 0.0
        %1817 = vmatprep.subr.mxu0 0.0
        %1818 = vmatpush1.msra.mxu0 0.0
        %1819 = vmatprep.subr.mxu0 0.0
        %1820 = vmatpush1.msra.mxu0 0.0
        %1821 = vmatprep.subr.mxu0 0.0
        %1822 = vmatpush1.msra.mxu0 %v1789
        %1823 = vmatprep.subr.mxu0 0.0
        %1824 = vmatpush2.msra.mxu0 0.0
        %1825 = vmatprep.subr.mxu0 0.0
        %1826 = vmatpush2.msra.mxu0 0.0
        %1827 = vmatprep.subr.mxu0 0.0
        %1828 = vmatpush2.msra.mxu0 0.0
        %1829 = vmatprep.subr.mxu0 0.0
        %1830 = vmatpush2.msra.mxu0 0.0
        %1831 = vmatprep.subr.mxu0 0.0
        %1832 = vmatpush2.msra.mxu0 0.0
        %1833 = vmatprep.subr.mxu0 0.0
        %1834 = vmatpush2.msra.mxu0 0.0
        %1835 = vmatprep.subr.mxu0 0.0
        %1836 = vmatpush2.msra.mxu0 0.0
        %1837 = vmatprep.subr.mxu0 0.0
        %1838 = vmatpush2.msra.mxu0 0.0
        %1839 = vmatprep.subr.mxu0 0.0
        %1840 = vmatpush2.msra.mxu0 0.0
        %1841 = vmatprep.subr.mxu0 0.0
        %1842 = vmatpush2.msra.mxu0 0.0
        %1843 = vmatprep.subr.mxu0 0.0
        %1844 = vmatpush2.msra.mxu0 0.0
        %1845 = vmatprep.subr.mxu0 0.0
        %1846 = vmatpush2.msra.mxu0 0.0
        %1847 = vmatprep.subr.mxu0 0.0
        %1848 = vmatpush2.msra.mxu0 0.0
        %1849 = vmatprep.subr.mxu0 0.0
        %1850 = vmatpush2.msra.mxu0 0.0
        %1851 = vmatprep.subr.mxu0 0.0
        %1852 = vmatpush2.msra.mxu0 0.0
        %1853 = vmatprep.subr.mxu0 0.0
        %1854 = vmatpush2.msra.mxu0 0.0
        %1855 = vmatprep.mubr.f32.mxu0 0.0
        %1856 = vmatmul.mubr.f32.gmra.mxu0 %v1768
        %v1857 = vpop.f32.mrf.mxu0
        %v1858 = vadd.f32 %v1734, %v1857
        %v1859 = vpop.f32.mrf.mxu0
        %1860 = vmatprep.mubr.f32.mxu0 0.0
        %1861 = vmatmul.mubr.f32.gmra.mxu0 %v1771
        %v1862 = vpop.f32.mrf.mxu0
        %v1863 = vadd.f32 %v1739, %v1862
        %v1864 = vpop.f32.mrf.mxu0
        %1865 = vmatprep.mubr.f32.mxu0 0.0
        %1866 = vmatmul.mubr.f32.gmra.mxu0 %v1774
        %v1867 = vpop.f32.mrf.mxu0
        %v1868 = vadd.f32 %v1744, %v1867
        %v1869 = vpop.f32.mrf.mxu0
        %1870 = vmatprep.mubr.f32.mxu0 0.0
        %1871 = vmatmul.mubr.f32.gmra.mxu0 %v1777
        %v1872 = vpop.f32.mrf.mxu0
        %v1873 = vadd.f32 %v1749, %v1872
        %v1874 = vpop.f32.mrf.mxu0
        %1875 = vmatprep.mubr.f32.mxu0 0.0
        %1876 = vmatmul.mubr.f32.gmra.mxu0 %v1780
        %v1877 = vpop.f32.mrf.mxu0
        %v1878 = vadd.f32 %v1754, %v1877
        %v1879 = vpop.f32.mrf.mxu0
        %1880 = vmatprep.mubr.f32.mxu0 0.0
        %1881 = vmatmul.mubr.f32.gmra.mxu0 %v1783
        %v1882 = vpop.f32.mrf.mxu0
        %v1883 = vadd.f32 %v1759, %v1882
        %v1884 = vpop.f32.mrf.mxu0
        %1885 = vmatprep.mubr.f32.mxu0 0.0
        %1886 = vmatmul.mubr.f32.gmra.mxu0 %v1786
        %v1887 = vpop.f32.mrf.mxu0
        %v1888 = vadd.f32 %v1764, %v1887
        %v1889 = vpop.f32.mrf.mxu0
        %1890 = vdwg.mxu0
        %s1891 = scalar_lea.vmem %s684, 16 [#allocation3]
        %v1892 = vld [vmem:[%s1891] sm:$0xff]
        %v1894 = vsel %vm754, %v1892, 0
        %1896 = vmatprep.subr.mxu0 0.0
        %1897 = vmatpush1.msra.mxu0 0.0
        %1898 = vmatprep.subr.mxu0 0.0
        %1899 = vmatpush1.msra.mxu0 0.0
        %1900 = vmatprep.subr.mxu0 0.0
        %1901 = vmatpush1.msra.mxu0 0.0
        %1902 = vmatprep.subr.mxu0 0.0
        %1903 = vmatpush1.msra.mxu0 0.0
        %1904 = vmatprep.subr.mxu0 0.0
        %1905 = vmatpush1.msra.mxu0 0.0
        %1906 = vmatprep.subr.mxu0 0.0
        %1907 = vmatpush1.msra.mxu0 0.0
        %1908 = vmatprep.subr.mxu0 0.0
        %1909 = vmatpush1.msra.mxu0 0.0
        %1910 = vmatprep.subr.mxu0 0.0
        %1911 = vmatpush1.msra.mxu0 0.0
        %1912 = vmatprep.subr.mxu0 0.0
        %1913 = vmatpush1.msra.mxu0 0.0
        %1914 = vmatprep.subr.mxu0 0.0
        %1915 = vmatpush1.msra.mxu0 0.0
        %1916 = vmatprep.subr.mxu0 0.0
        %1917 = vmatpush1.msra.mxu0 0.0
        %1918 = vmatprep.subr.mxu0 0.0
        %1919 = vmatpush1.msra.mxu0 0.0
        %1920 = vmatprep.subr.mxu0 0.0
        %1921 = vmatpush1.msra.mxu0 0.0
        %1922 = vmatprep.subr.mxu0 0.0
        %1923 = vmatpush1.msra.mxu0 0.0
        %1924 = vmatprep.subr.mxu0 0.0
        %1925 = vmatpush1.msra.mxu0 0.0
        %1926 = vmatprep.subr.mxu0 0.0
        %1927 = vmatpush1.msra.mxu0 %v1665
        %1928 = vmatprep.subr.mxu0 0.0
        %1929 = vmatpush2.msra.mxu0 0.0
        %1930 = vmatprep.subr.mxu0 0.0
        %1931 = vmatpush2.msra.mxu0 0.0
        %1932 = vmatprep.subr.mxu0 0.0
        %1933 = vmatpush2.msra.mxu0 0.0
        %1934 = vmatprep.subr.mxu0 0.0
        %1935 = vmatpush2.msra.mxu0 0.0
        %1936 = vmatprep.subr.mxu0 0.0
        %1937 = vmatpush2.msra.mxu0 0.0
        %1938 = vmatprep.subr.mxu0 0.0
        %1939 = vmatpush2.msra.mxu0 0.0
        %1940 = vmatprep.subr.mxu0 0.0
        %1941 = vmatpush2.msra.mxu0 0.0
        %1942 = vmatprep.subr.mxu0 0.0
        %1943 = vmatpush2.msra.mxu0 0.0
        %1944 = vmatprep.subr.mxu0 0.0
        %1945 = vmatpush2.msra.mxu0 0.0
        %1946 = vmatprep.subr.mxu0 0.0
        %1947 = vmatpush2.msra.mxu0 0.0
        %1948 = vmatprep.subr.mxu0 0.0
        %1949 = vmatpush2.msra.mxu0 0.0
        %1950 = vmatprep.subr.mxu0 0.0
        %1951 = vmatpush2.msra.mxu0 0.0
        %1952 = vmatprep.subr.mxu0 0.0
        %1953 = vmatpush2.msra.mxu0 0.0
        %1954 = vmatprep.subr.mxu0 0.0
        %1955 = vmatpush2.msra.mxu0 0.0
        %1956 = vmatprep.subr.mxu0 0.0
        %1957 = vmatpush2.msra.mxu0 0.0
        %1958 = vmatprep.subr.mxu0 0.0
        %1959 = vmatpush2.msra.mxu0 0.0
        %1960 = vmatprep.mubr.f32.mxu0 0.0
        %1961 = vmatmul.mubr.f32.gmra.mxu0 %v1894
        %v1962 = vpop.f32.mrf.mxu0
        %v1963 = vadd.f32 0.0, %v1962
        %v1964 = vpop.f32.mrf.mxu0
        %1965 = vdwg.mxu0
        %v1967 = vsel %vm754, %v1632, 0
        %1969 = vmatprep.subr.mxu0 0.0
        %1970 = vmatpush1.msra.mxu0 0.0
        %1971 = vmatprep.subr.mxu0 0.0
        %1972 = vmatpush1.msra.mxu0 0.0
        %1973 = vmatprep.subr.mxu0 0.0
        %1974 = vmatpush1.msra.mxu0 0.0
        %1975 = vmatprep.subr.mxu0 0.0
        %1976 = vmatpush1.msra.mxu0 0.0
        %1977 = vmatprep.subr.mxu0 0.0
        %1978 = vmatpush1.msra.mxu0 0.0
        %1979 = vmatprep.subr.mxu0 0.0
        %1980 = vmatpush1.msra.mxu0 0.0
        %1981 = vmatprep.subr.mxu0 0.0
        %1982 = vmatpush1.msra.mxu0 0.0
        %1983 = vmatprep.subr.mxu0 0.0
        %1984 = vmatpush1.msra.mxu0 0.0
        %1985 = vmatprep.subr.mxu0 0.0
        %1986 = vmatpush1.msra.mxu0 0.0
        %1987 = vmatprep.subr.mxu0 0.0
        %1988 = vmatpush1.msra.mxu0 0.0
        %1989 = vmatprep.subr.mxu0 0.0
        %1990 = vmatpush1.msra.mxu0 0.0
        %1991 = vmatprep.subr.mxu0 0.0
        %1992 = vmatpush1.msra.mxu0 0.0
        %1993 = vmatprep.subr.mxu0 0.0
        %1994 = vmatpush1.msra.mxu0 0.0
        %1995 = vmatprep.subr.mxu0 0.0
        %1996 = vmatpush1.msra.mxu0 0.0
        %1997 = vmatprep.subr.mxu0 0.0
        %1998 = vmatpush1.msra.mxu0 0.0
        %1999 = vmatprep.subr.mxu0 0.0
        %2000 = vmatpush1.msra.mxu0 %v1789
        %2001 = vmatprep.subr.mxu0 0.0
        %2002 = vmatpush2.msra.mxu0 0.0
        %2003 = vmatprep.subr.mxu0 0.0
        %2004 = vmatpush2.msra.mxu0 0.0
        %2005 = vmatprep.subr.mxu0 0.0
        %2006 = vmatpush2.msra.mxu0 0.0
        %2007 = vmatprep.subr.mxu0 0.0
        %2008 = vmatpush2.msra.mxu0 0.0
        %2009 = vmatprep.subr.mxu0 0.0
        %2010 = vmatpush2.msra.mxu0 0.0
        %2011 = vmatprep.subr.mxu0 0.0
        %2012 = vmatpush2.msra.mxu0 0.0
        %2013 = vmatprep.subr.mxu0 0.0
        %2014 = vmatpush2.msra.mxu0 0.0
        %2015 = vmatprep.subr.mxu0 0.0
        %2016 = vmatpush2.msra.mxu0 0.0
        %2017 = vmatprep.subr.mxu0 0.0
        %2018 = vmatpush2.msra.mxu0 0.0
        %2019 = vmatprep.subr.mxu0 0.0
        %2020 = vmatpush2.msra.mxu0 0.0
        %2021 = vmatprep.subr.mxu0 0.0
        %2022 = vmatpush2.msra.mxu0 0.0
        %2023 = vmatprep.subr.mxu0 0.0
        %2024 = vmatpush2.msra.mxu0 0.0
        %2025 = vmatprep.subr.mxu0 0.0
        %2026 = vmatpush2.msra.mxu0 0.0
        %2027 = vmatprep.subr.mxu0 0.0
        %2028 = vmatpush2.msra.mxu0 0.0
        %2029 = vmatprep.subr.mxu0 0.0
        %2030 = vmatpush2.msra.mxu0 0.0
        %2031 = vmatprep.subr.mxu0 0.0
        %2032 = vmatpush2.msra.mxu0 0.0
        %2033 = vmatprep.mubr.f32.mxu0 0.0
        %2034 = vmatmul.mubr.f32.gmra.mxu0 %v1967
        %v2035 = vpop.f32.mrf.mxu0
        %v2036 = vadd.f32 %v1963, %v2035
        %v2037 = vpop.f32.mrf.mxu0
        %2038 = vdwg.mxu0
        %s2039 = scalar_lea.vmem %s729, 32
        %v2040 = vld [vmem:[%s2039] sm:$0xf]
        %v2041 = vld [vmem:[%s1624 + $0x1] sm:$0xff]
        %v2042 = vld [vmem:[%s1624 + $0x11] sm:$0xff]
        %v2043 = vld [vmem:[%s1624 + $0x21] sm:$0xff]
        %v2044 = vld [vmem:[%s1624 + $0x31] sm:$0xff]
        %v2045 = vld [vmem:[%s1624 + $0x41] sm:$0xff]
        %v2046 = vld [vmem:[%s1624 + $0x51] sm:$0xff]
        %v2047 = vld [vmem:[%s1624 + $0x61] sm:$0xff]
        %v2049 = vsel %vm754, %v2041, 0
        %v2052 = vsel %vm754, %v2042, 0
        %v2055 = vsel %vm754, %v2043, 0
        %v2058 = vsel %vm754, %v2044, 0
        %v2061 = vsel %vm754, %v2045, 0
        %v2064 = vsel %vm754, %v2046, 0
        %v2067 = vsel %vm754, %v2047, 0
        %v2070 = vsel %vm779, %v2040, 0
        %2072 = vmatprep.subr.mxu0 0.0
        %2073 = vmatpush1.msra.mxu0 0.0
        %2074 = vmatprep.subr.mxu0 0.0
        %2075 = vmatpush1.msra.mxu0 0.0
        %2076 = vmatprep.subr.mxu0 0.0
        %2077 = vmatpush1.msra.mxu0 0.0
        %2078 = vmatprep.subr.mxu0 0.0
        %2079 = vmatpush1.msra.mxu0 0.0
        %2080 = vmatprep.subr.mxu0 0.0
        %2081 = vmatpush1.msra.mxu0 0.0
        %2082 = vmatprep.subr.mxu0 0.0
        %2083 = vmatpush1.msra.mxu0 0.0
        %2084 = vmatprep.subr.mxu0 0.0
        %2085 = vmatpush1.msra.mxu0 0.0
        %2086 = vmatprep.subr.mxu0 0.0
        %2087 = vmatpush1.msra.mxu0 0.0
        %2088 = vmatprep.subr.mxu0 0.0
        %2089 = vmatpush1.msra.mxu0 0.0
        %2090 = vmatprep.subr.mxu0 0.0
        %2091 = vmatpush1.msra.mxu0 0.0
        %2092 = vmatprep.subr.mxu0 0.0
        %2093 = vmatpush1.msra.mxu0 0.0
        %2094 = vmatprep.subr.mxu0 0.0
        %2095 = vmatpush1.msra.mxu0 0.0
        %2096 = vmatprep.subr.mxu0 0.0
        %2097 = vmatpush1.msra.mxu0 0.0
        %2098 = vmatprep.subr.mxu0 0.0
        %2099 = vmatpush1.msra.mxu0 0.0
        %2100 = vmatprep.subr.mxu0 0.0
        %2101 = vmatpush1.msra.mxu0 0.0
        %2102 = vmatprep.subr.mxu0 0.0
        %2103 = vmatpush1.msra.mxu0 %v2070
        %2104 = vmatprep.subr.mxu0 0.0
        %2105 = vmatpush2.msra.mxu0 0.0
        %2106 = vmatprep.subr.mxu0 0.0
        %2107 = vmatpush2.msra.mxu0 0.0
        %2108 = vmatprep.subr.mxu0 0.0
        %2109 = vmatpush2.msra.mxu0 0.0
        %2110 = vmatprep.subr.mxu0 0.0
        %2111 = vmatpush2.msra.mxu0 0.0
        %2112 = vmatprep.subr.mxu0 0.0
        %2113 = vmatpush2.msra.mxu0 0.0
        %2114 = vmatprep.subr.mxu0 0.0
        %2115 = vmatpush2.msra.mxu0 0.0
        %2116 = vmatprep.subr.mxu0 0.0
        %2117 = vmatpush2.msra.mxu0 0.0
        %2118 = vmatprep.subr.mxu0 0.0
        %2119 = vmatpush2.msra.mxu0 0.0
        %2120 = vmatprep.subr.mxu0 0.0
        %2121 = vmatpush2.msra.mxu0 0.0
        %2122 = vmatprep.subr.mxu0 0.0
        %2123 = vmatpush2.msra.mxu0 0.0
        %2124 = vmatprep.subr.mxu0 0.0
        %2125 = vmatpush2.msra.mxu0 0.0
        %2126 = vmatprep.subr.mxu0 0.0
        %2127 = vmatpush2.msra.mxu0 0.0
        %2128 = vmatprep.subr.mxu0 0.0
        %2129 = vmatpush2.msra.mxu0 0.0
        %2130 = vmatprep.subr.mxu0 0.0
        %2131 = vmatpush2.msra.mxu0 0.0
        %2132 = vmatprep.subr.mxu0 0.0
        %2133 = vmatpush2.msra.mxu0 0.0
        %2134 = vmatprep.subr.mxu0 0.0
        %2135 = vmatpush2.msra.mxu0 0.0
        %2136 = vmatprep.mubr.f32.mxu0 0.0
        %2137 = vmatmul.mubr.f32.gmra.mxu0 %v2049
        %v2138 = vpop.f32.mrf.mxu0
        %v2139 = vadd.f32 0.0, %v2138
        %v2140 = vpop.f32.mrf.mxu0
        %2141 = vmatprep.mubr.f32.mxu0 0.0
        %2142 = vmatmul.mubr.f32.gmra.mxu0 %v2052
        %v2143 = vpop.f32.mrf.mxu0
        %v2144 = vadd.f32 0.0, %v2143
        %v2145 = vpop.f32.mrf.mxu0
        %2146 = vmatprep.mubr.f32.mxu0 0.0
        %2147 = vmatmul.mubr.f32.gmra.mxu0 %v2055
        %v2148 = vpop.f32.mrf.mxu0
        %v2149 = vadd.f32 0.0, %v2148
        %v2150 = vpop.f32.mrf.mxu0
        %2151 = vmatprep.mubr.f32.mxu0 0.0
        %2152 = vmatmul.mubr.f32.gmra.mxu0 %v2058
        %v2153 = vpop.f32.mrf.mxu0
        %v2154 = vadd.f32 0.0, %v2153
        %v2155 = vpop.f32.mrf.mxu0
        %2156 = vmatprep.mubr.f32.mxu0 0.0
        %2157 = vmatmul.mubr.f32.gmra.mxu0 %v2061
        %v2158 = vpop.f32.mrf.mxu0
        %v2159 = vadd.f32 0.0, %v2158
        %v2160 = vpop.f32.mrf.mxu0
        %2161 = vmatprep.mubr.f32.mxu0 0.0
        %2162 = vmatmul.mubr.f32.gmra.mxu0 %v2064
        %v2163 = vpop.f32.mrf.mxu0
        %v2164 = vadd.f32 0.0, %v2163
        %v2165 = vpop.f32.mrf.mxu0
        %2166 = vmatprep.mubr.f32.mxu0 0.0
        %2167 = vmatmul.mubr.f32.gmra.mxu0 %v2067
        %v2168 = vpop.f32.mrf.mxu0
        %v2169 = vadd.f32 0.0, %v2168
        %v2170 = vpop.f32.mrf.mxu0
        %2171 = vdwg.mxu0
        %v2172 = vadd.f32 %v1858, %v2139
        %v2173 = vadd.f32 %v1863, %v2144
        %v2174 = vadd.f32 %v1868, %v2149
        %v2175 = vadd.f32 %v1873, %v2154
        %v2176 = vadd.f32 %v1878, %v2159
        %v2177 = vadd.f32 %v1883, %v2164
        %v2178 = vadd.f32 %v1888, %v2169
        %v2179 = vld [vmem:[%s684 + $0x1] sm:$0xff]
        %v2181 = vsel %vm754, %v2179, 0
        %2183 = vmatprep.subr.mxu0 0.0
        %2184 = vmatpush1.msra.mxu0 0.0
        %2185 = vmatprep.subr.mxu0 0.0
        %2186 = vmatpush1.msra.mxu0 0.0
        %2187 = vmatprep.subr.mxu0 0.0
        %2188 = vmatpush1.msra.mxu0 0.0
        %2189 = vmatprep.subr.mxu0 0.0
        %2190 = vmatpush1.msra.mxu0 0.0
        %2191 = vmatprep.subr.mxu0 0.0
        %2192 = vmatpush1.msra.mxu0 0.0
        %2193 = vmatprep.subr.mxu0 0.0
        %2194 = vmatpush1.msra.mxu0 0.0
        %2195 = vmatprep.subr.mxu0 0.0
        %2196 = vmatpush1.msra.mxu0 0.0
        %2197 = vmatprep.subr.mxu0 0.0
        %2198 = vmatpush1.msra.mxu0 0.0
        %2199 = vmatprep.subr.mxu0 0.0
        %2200 = vmatpush1.msra.mxu0 0.0
        %2201 = vmatprep.subr.mxu0 0.0
        %2202 = vmatpush1.msra.mxu0 0.0
        %2203 = vmatprep.subr.mxu0 0.0
        %2204 = vmatpush1.msra.mxu0 0.0
        %2205 = vmatprep.subr.mxu0 0.0
        %2206 = vmatpush1.msra.mxu0 0.0
        %2207 = vmatprep.subr.mxu0 0.0
        %2208 = vmatpush1.msra.mxu0 0.0
        %2209 = vmatprep.subr.mxu0 0.0
        %2210 = vmatpush1.msra.mxu0 0.0
        %2211 = vmatprep.subr.mxu0 0.0
        %2212 = vmatpush1.msra.mxu0 0.0
        %2213 = vmatprep.subr.mxu0 0.0
        %2214 = vmatpush1.msra.mxu0 %v2070
        %2215 = vmatprep.subr.mxu0 0.0
        %2216 = vmatpush2.msra.mxu0 0.0
        %2217 = vmatprep.subr.mxu0 0.0
        %2218 = vmatpush2.msra.mxu0 0.0
        %2219 = vmatprep.subr.mxu0 0.0
        %2220 = vmatpush2.msra.mxu0 0.0
        %2221 = vmatprep.subr.mxu0 0.0
        %2222 = vmatpush2.msra.mxu0 0.0
        %2223 = vmatprep.subr.mxu0 0.0
        %2224 = vmatpush2.msra.mxu0 0.0
        %2225 = vmatprep.subr.mxu0 0.0
        %2226 = vmatpush2.msra.mxu0 0.0
        %2227 = vmatprep.subr.mxu0 0.0
        %2228 = vmatpush2.msra.mxu0 0.0
        %2229 = vmatprep.subr.mxu0 0.0
        %2230 = vmatpush2.msra.mxu0 0.0
        %2231 = vmatprep.subr.mxu0 0.0
        %2232 = vmatpush2.msra.mxu0 0.0
        %2233 = vmatprep.subr.mxu0 0.0
        %2234 = vmatpush2.msra.mxu0 0.0
        %2235 = vmatprep.subr.mxu0 0.0
        %2236 = vmatpush2.msra.mxu0 0.0
        %2237 = vmatprep.subr.mxu0 0.0
        %2238 = vmatpush2.msra.mxu0 0.0
        %2239 = vmatprep.subr.mxu0 0.0
        %2240 = vmatpush2.msra.mxu0 0.0
        %2241 = vmatprep.subr.mxu0 0.0
        %2242 = vmatpush2.msra.mxu0 0.0
        %2243 = vmatprep.subr.mxu0 0.0
        %2244 = vmatpush2.msra.mxu0 0.0
        %2245 = vmatprep.subr.mxu0 0.0
        %2246 = vmatpush2.msra.mxu0 0.0
        %2247 = vmatprep.mubr.f32.mxu0 0.0
        %2248 = vmatmul.mubr.f32.gmra.mxu0 %v2181
        %v2249 = vpop.f32.mrf.mxu0
        %v2250 = vadd.f32 0.0, %v2249
        %v2251 = vpop.f32.mrf.mxu0
        %2252 = vdwg.mxu0
        %v2253 = vadd.f32 %v2036, %v2250
        %v2254 = vld [vmem:[%s732] sm:$0x1]
        %v2255 = vadd.f32 %v1614, %v2172
        %v2256 = vadd.f32 %v1615, %v2173
        %v2257 = vadd.f32 %v1616, %v2174
        %v2258 = vadd.f32 %v1617, %v2175
        %v2259 = vadd.f32 %v1618, %v2176
        %v2260 = vadd.f32 %v1619, %v2177
        %v2261 = vadd.f32 %v1620, %v2178
        %v2263 = vlaneseq
        %v2264 = vshrl.u32 %v2263, 7
        %v2265 = vsub.s32 0, %v2264
        %v2266 = vrot.slane %v2254, %v2265
        %v2268 = vadd.f32 %v2255, %v2266
        %v2269 = vadd.f32 %v2256, %v2266
        %v2270 = vadd.f32 %v2257, %v2266
        %v2271 = vadd.f32 %v2258, %v2266
        %v2272 = vadd.f32 %v2259, %v2266
        %v2273 = vadd.f32 %v2260, %v2266
        %v2274 = vadd.f32 %v2261, %v2266
        %v2275 = vadd.f32 %v1621, %v2253
        %v2276 = vadd.f32 %v2275, %v2266
        %vm2277 = vcmask 64512
        %2278 = vst.msk [vmem:[%s717] sm:$0xff] %vm2277, %v2268
        %2279 = vst.msk [vmem:[%s717 + $0x8] sm:$0xff] %vm2277, %v2269
        %2280 = vst.msk [vmem:[%s717 + $0x10] sm:$0xff] %vm2277, %v2270
        %2281 = vst.msk [vmem:[%s717 + $0x18] sm:$0xff] %vm2277, %v2271
        %2282 = vst.msk [vmem:[%s717 + $0x20] sm:$0xff] %vm2277, %v2272
        %2283 = vst.msk [vmem:[%s717 + $0x28] sm:$0xff] %vm2277, %v2273
        %2284 = vst.msk [vmem:[%s717 + $0x30] sm:$0xff] %vm2277, %v2274
        %s2285 = scalar_lea.vmem %s717, 56 [#allocation4]
        %2286 = vst.msk [vmem:[%s2285] sm:$0xff] %vm2277, %v2276
        %s2287 = sand.u32 %s161, 1
        %s2288 = scalar_lea.sflag [#allocation5], %s2287
        %s2289 = sand.u32 %s161, 1
        %s2290 = smul.addr %s2289, 64
        %s2291 = scalar_lea.vmem [#allocation4], %s2290
        // Predicated region
        $region127: #{tpu_custom_call.1} parent=117 // pred_check
          %p2292 = pneg %p171
        $region128: #{tpu_custom_call.1} parent=117 // pred_check_branch
          %2294 = sbr.rel (%p2292) target = $region130
        $region129: #{tpu_custom_call.1} parent=117 // pred_region
          %s2295 = smul.u32 8, %s24
          %s2297 = ssub.s32 1024, 1024
          %2298 = vsyncadd %s2288, %s2297
          %s2299 = sadd.s32 %s25, %s2295
          %s2300 = smul.addr %s23, 8
          %s2301 = sadd.s32 %s2299, %s2300
          %s2302 = smul.addr %s2301, 128
          %s2303 = scalar_lea.hbm %s4, %s2302
          %s2304 = sshll.u32 %s2291, 4
          %s2305 = int_to_ptr.vmem [resolvable:$true] %s2304
          %2310 = dma.vmem_to_hbm [thread:$0]  %s2305, 1024, %s2303, %s2288, 128, 128, 8
        $region130: #{tpu_custom_call.1} parent=117 // pred_fallthru
          _
      $region118: #{tpu_custom_call.1} parent=5 // pred_fallthru
        _
      %p2311 = scmp.le.s32.totalorder 2, %s13
      // Predicated region
      $region131: #{tpu_custom_call.1} parent=5 // pred_check
        %p2312 = pneg %p2311
      $region132: #{tpu_custom_call.1} parent=5 // pred_check_branch
        %2314 = sbr.rel (%p2312) target = $region134
      $region133: #{tpu_custom_call.1} parent=5 // pred_region
        %s2315 = ssub.s32 %s13, 2
        // Predicated region
        $region135: #{tpu_custom_call.1} parent=133 // pred_check
          %p2316 = pneg %p177
        $region136: #{tpu_custom_call.1} parent=133 // pred_check_branch
          %2318 = sbr.rel (%p2316) target = $region138
        $region137: #{tpu_custom_call.1} parent=133 // pred_region
          %s2319 = sand.u32 %s162, 1
          %s2320 = scalar_lea.sflag [#allocation5], %s2319
          %s2321 = sand.u32 %s162, 1
          %s2322 = smul.addr %s2321, 64
          %s2323 = scalar_lea.vmem [#allocation4], %s2322
          %2324 = dma.done %s2320, 1024
        $region138: #{tpu_custom_call.1} parent=133 // pred_fallthru
          _
      $region134: #{tpu_custom_call.1} parent=5 // pred_fallthru
        _
    $region6: #{tpu_custom_call.1} parent=1 // loop_footer
      %s17 = sadd.s32 1, %s13
    $region7: #{tpu_custom_call.1} parent=1 // loop_footer_branch
      %12 = sbr.rel target = $region3
    $region8: #{tpu_custom_call.1} parent=1 // loop_exit
      _
    %2325 = vsyncpa [#allocation5], 1
    %s2326 = scalar_lea.sflag [#allocation5], 1
    %2327 = vsyncpa %s2326, 1

</llo_original>
